<compile_context>
chip_gen: v7x
topology: tpu7x:2x2x1
jax: 0.10.0
libtpu: 0.0.40
codegen_flags: <defaults>
</compile_context>

<pallas_src>
import jax
import jax.numpy as jnp
from jax.experimental import pallas as pl
from jax.experimental.pallas import tpu as pltpu

# ---- Small shapes consistent with the module's transformer config ----
B = 2                                  # batch
N = 8                                  # tokens per sample
DIM = 48                               # embed_dim (small stand-in)
NUM_HEADS = 6                          # matches VisionTransformer(num_heads=6)
HEAD_DIM = DIM // NUM_HEADS            # 8
ALL_HEAD_DIM = NUM_HEADS * HEAD_DIM    # 48 (attn_head_dim=None)
QKV3 = 3 * ALL_HEAD_DIM                # 144
MLP_RATIO = 4.0
HIDDEN = int(DIM * MLP_RATIO)          # 192
DEPTH = 6                              # matches VisionTransformer(depth=6)
SCALE = HEAD_DIM ** (-0.5)             # qk_scale=None
LN_EPS = 1e-6                          # partial(nn.LayerNorm, eps=1e-6)
# qkv_bias=True; init_values=0.0 -> no gamma; drop/drop_path -> identity (eval)


def _layernorm(x, w, b):
    mu = jnp.mean(x, axis=-1, keepdims=True)
    xc = x - mu
    var = jnp.mean(xc * xc, axis=-1, keepdims=True)
    return xc * jax.lax.rsqrt(var + LN_EPS) * w + b


def _erf(x):
    # Abramowitz & Stegun 7.1.26, |err| < 1.5e-7.  Uses only exp/mul/add/where
    # so it lowers cleanly in Mosaic (no reliance on a lax.erf lowering rule).
    p = 0.3275911
    a1, a2, a3, a4, a5 = (0.254829592, -0.284496736, 1.421413741,
                          -1.453152027, 1.061405429)
    ax = jnp.abs(x)
    t = 1.0 / (1.0 + p * ax)
    poly = ((((a5 * t + a4) * t + a3) * t + a2) * t + a1) * t
    y = 1.0 - poly * jnp.exp(-ax * ax)
    return jnp.where(x >= 0, y, -y)


def _gelu(x):
    # exact (erf) GELU — same semantics as torch nn.GELU() default.
    return 0.5 * x * (1.0 + _erf(x * 0.7071067811865476))


def vit_kernel(x_ref, pos_ref, vecs_ref, bqkv_ref, wqkv_ref, wproj_ref,
               wfc1_ref, bfc1_ref, wfc2_ref, lnf_ref, o_ref):
    l = pl.program_id(1)

    # Layer 0: initialize the VMEM-resident activation with x + pos_embed.
    @pl.when(l == 0)
    def _():
        o_ref[...] = x_ref[...] + pos_ref[...]

    x = o_ref[0]                          # (N, DIM) resident activation
    vecs = vecs_ref[0]                    # (8, DIM) packed per-layer vectors
    ln1_w, ln1_b = vecs[0:1, :], vecs[1:2, :]
    b_proj = vecs[2:3, :]
    ln2_w, ln2_b = vecs[3:4, :], vecs[4:5, :]
    b_fc2 = vecs[5:6, :]

    # ---------------- attention branch ----------------
    xn = _layernorm(x, ln1_w, ln1_b)                                   # (N, DIM)
    # Single fused QKV matmul; attention scale already folded into the Q slice
    # of the weights and bias at prep time.
    qkv = jnp.dot(xn, wqkv_ref[0], preferred_element_type=jnp.float32) \
        + bqkv_ref[0]                                                  # (N, 3*AHD)
    q = qkv[:, 0:ALL_HEAD_DIM]
    k = qkv[:, ALL_HEAD_DIM:2 * ALL_HEAD_DIM]
    v = qkv[:, 2 * ALL_HEAD_DIM:3 * ALL_HEAD_DIM]

    # Per-head views on a leading batch axis (layout ops only, no MXU pushes).
    qh = jnp.stack([q[:, h * HEAD_DIM:(h + 1) * HEAD_DIM]
                    for h in range(NUM_HEADS)], axis=0)                # (H, N, hd)
    kh = jnp.stack([k[:, h * HEAD_DIM:(h + 1) * HEAD_DIM]
                    for h in range(NUM_HEADS)], axis=0)
    vh = jnp.stack([v[:, h * HEAD_DIM:(h + 1) * HEAD_DIM]
                    for h in range(NUM_HEADS)], axis=0)

    s = jnp.einsum('hid,hjd->hij', qh, kh,
                   preferred_element_type=jnp.float32)                 # (H, N, N)
    s = s - jnp.max(s, axis=-1, keepdims=True)
    p = jnp.exp(s)
    p = p * pl.reciprocal(jnp.sum(p, axis=-1, keepdims=True), approx=False)

    o = jnp.einsum('hij,hjd->hid', p, vh,
                   preferred_element_type=jnp.float32)                 # (H, N, hd)
    # Head merge back to lanes, then ONE 48-deep output-projection matmul.
    o_cat = jnp.concatenate([o[h] for h in range(NUM_HEADS)], axis=-1)  # (N, AHD)
    y = jnp.dot(o_cat, wproj_ref[0],
                preferred_element_type=jnp.float32) + b_proj           # (N, DIM)
    x = x + y                                                          # residual

    # ---------------- MLP branch ----------------
    xn2 = _layernorm(x, ln2_w, ln2_b)
    h1 = jnp.dot(xn2, wfc1_ref[0],
                 preferred_element_type=jnp.float32) + bfc1_ref[0]     # (N, HIDDEN)
    h1 = _gelu(h1)
    y2 = jnp.dot(h1, wfc2_ref[0],
                 preferred_element_type=jnp.float32) + b_fc2           # (N, DIM)
    x = x + y2                                                         # residual

    @pl.when(l < DEPTH - 1)
    def _():
        o_ref[0] = x

    # Final VisionTransformer LayerNorm fused into the last layer's iteration.
    @pl.when(l == DEPTH - 1)
    def _():
        o_ref[0] = _layernorm(x, lnf_ref[0:1, :], lnf_ref[1:2, :])


def make_params(key):
    """Canonical per-layer parameters (torch-equivalent; linear weights (in, out))."""
    s = 0.02
    kl, kf = jax.random.split(key)
    layer_keys = jax.random.split(kl, DEPTH)
    layers = []
    for i in range(DEPTH):
        k = jax.random.split(layer_keys[i], 13)
        layers.append({
            "ln1_w": 1.0 + s * jax.random.normal(k[0], (DIM,), jnp.float32),
            "ln1_b": s * jax.random.normal(k[1], (DIM,), jnp.float32),
            "w_qkv": s * jax.random.normal(k[2], (DIM, QKV3), jnp.float32),
            "q_bias": s * jax.random.normal(k[3], (ALL_HEAD_DIM,), jnp.float32),
            "v_bias": s * jax.random.normal(k[4], (ALL_HEAD_DIM,), jnp.float32),
            "w_proj": s * jax.random.normal(k[5], (ALL_HEAD_DIM, DIM), jnp.float32),
            "b_proj": s * jax.random.normal(k[6], (DIM,), jnp.float32),
            "ln2_w": 1.0 + s * jax.random.normal(k[7], (DIM,), jnp.float32),
            "ln2_b": s * jax.random.normal(k[8], (DIM,), jnp.float32),
            "w_fc1": s * jax.random.normal(k[9], (DIM, HIDDEN), jnp.float32),
            "b_fc1": s * jax.random.normal(k[10], (HIDDEN,), jnp.float32),
            "w_fc2": s * jax.random.normal(k[11], (HIDDEN, DIM), jnp.float32),
            "b_fc2": s * jax.random.normal(k[12], (DIM,), jnp.float32),
        })
    kf1, kf2 = jax.random.split(kf)
    lnf_w = 1.0 + s * jax.random.normal(kf1, (DIM,), jnp.float32)
    lnf_b = s * jax.random.normal(kf2, (DIM,), jnp.float32)
    return layers, lnf_w, lnf_b


def prepare_kernel_weights(layers, lnf_w, lnf_b):
    """Static re-layout: per-layer weights stacked on a leading depth axis,
    attention scale folded into the Q slices, six small (DIM,) vectors per
    layer packed into one (8, DIM) buffer."""
    zero = jnp.zeros((DIM,), jnp.float32)
    vecs, b_qkv, w_qkv, w_proj, w_fc1, b_fc1, w_fc2 = [], [], [], [], [], [], []
    for p in layers:
        vecs.append(jnp.stack([p["ln1_w"], p["ln1_b"], p["b_proj"],
                               p["ln2_w"], p["ln2_b"], p["b_fc2"],
                               zero, zero], axis=0))                    # (8, DIM)
        wq = p["w_qkv"][:, :ALL_HEAD_DIM] * SCALE
        w_qkv.append(jnp.concatenate([wq, p["w_qkv"][:, ALL_HEAD_DIM:]], axis=1))
        # torch: qkv_bias = cat(q_bias, zeros_like(v_bias), v_bias)
        b_qkv.append(jnp.concatenate(
            [p["q_bias"] * SCALE,
             jnp.zeros((ALL_HEAD_DIM,), jnp.float32),
             p["v_bias"]])[None, :])                                    # (1, QKV3)
        w_proj.append(p["w_proj"])
        w_fc1.append(p["w_fc1"])
        b_fc1.append(p["b_fc1"][None, :])
        w_fc2.append(p["w_fc2"])
    return {
        "vecs": jnp.stack(vecs),          # (L, 8, DIM)
        "b_qkv": jnp.stack(b_qkv),        # (L, 1, QKV3)
        "w_qkv": jnp.stack(w_qkv),        # (L, DIM, QKV3)
        "w_proj": jnp.stack(w_proj),      # (L, AHD, DIM)
        "w_fc1": jnp.stack(w_fc1),        # (L, DIM, HIDDEN)
        "b_fc1": jnp.stack(b_fc1),        # (L, 1, HIDDEN)
        "w_fc2": jnp.stack(w_fc2),        # (L, HIDDEN, DIM)
        "lnf": jnp.stack([lnf_w, lnf_b]),  # (2, DIM)
    }


@jax.jit
def vit_forward(x, pos, kw):
    return pl.pallas_call(
        vit_kernel,
        out_shape=jax.ShapeDtypeStruct((B, N, DIM), x.dtype),
        grid_spec=pltpu.PrefetchScalarGridSpec(
            num_scalar_prefetch=0,
            grid=(B, DEPTH),
            in_specs=[
                pl.BlockSpec((1, N, DIM), lambda b, l: (b, 0, 0)),        # x
                pl.BlockSpec((1, N, DIM), lambda b, l: (b, 0, 0)),        # pos_embed
                pl.BlockSpec((1, 8, DIM), lambda b, l: (l, 0, 0)),        # vecs
                pl.BlockSpec((1, 1, QKV3), lambda b, l: (l, 0, 0)),       # b_qkv
                pl.BlockSpec((1, DIM, QKV3), lambda b, l: (l, 0, 0)),     # w_qkv
                pl.BlockSpec((1, ALL_HEAD_DIM, DIM), lambda b, l: (l, 0, 0)),  # w_proj
                pl.BlockSpec((1, DIM, HIDDEN), lambda b, l: (l, 0, 0)),   # w_fc1
                pl.BlockSpec((1, 1, HIDDEN), lambda b, l: (l, 0, 0)),     # b_fc1
                pl.BlockSpec((1, HIDDEN, DIM), lambda b, l: (l, 0, 0)),   # w_fc2
                pl.BlockSpec((2, DIM), lambda b, l: (0, 0)),              # final LN
            ],
            # Same block index across the layer axis -> activation stays
            # resident in VMEM for all DEPTH iterations (accumulator pattern).
            out_specs=pl.BlockSpec((1, N, DIM), lambda b, l: (b, 0, 0)),
        ),
        compiler_params=pltpu.CompilerParams(
            dimension_semantics=("parallel", "arbitrary")),
    )(x, pos, kw["vecs"], kw["b_qkv"], kw["w_qkv"], kw["w_proj"],
      kw["w_fc1"], kw["b_fc1"], kw["w_fc2"], kw["lnf"])


def vit_reference(x, pos, layers, lnf_w, lnf_b):
    """Pure-JAX reference mirroring VisionTransformer.forward_features (eval)."""
    def ln(v, w, b):
        mu = jnp.mean(v, axis=-1, keepdims=True)
        vc = v - mu
        var = jnp.mean(vc * vc, axis=-1, keepdims=True)
        return vc * jax.lax.rsqrt(var + LN_EPS) * w + b

    x = x + pos                                         # pos_drop(p=0) = identity
    for p in layers:
        xn = ln(x, p["ln1_w"], p["ln1_b"])
        qkv_bias = jnp.concatenate([p["q_bias"],
                                    jnp.zeros_like(p["v_bias"]), p["v_bias"]])
        qkv = xn @ p["w_qkv"] + qkv_bias
        qkv = qkv.reshape(B, N, 3, NUM_HEADS, HEAD_DIM).transpose(2, 0, 3, 1, 4)
        q, k, v = qkv[0] * SCALE, qkv[1], qkv[2]        # (B, H, N, hd)
        attn = jax.nn.softmax(q @ jnp.swapaxes(k, -1, -2), axis=-1)
        o = (attn @ v).transpose(0, 2, 1, 3).reshape(B, N, ALL_HEAD_DIM)
        x = x + (o @ p["w_proj"] + p["b_proj"])         # drop_path (eval) = identity
        xn2 = ln(x, p["ln2_w"], p["ln2_b"])
        h1 = xn2 @ p["w_fc1"] + p["b_fc1"]
        h1 = 0.5 * h1 * (1.0 + jax.lax.erf(h1 / jnp.sqrt(2.0)))   # exact GELU
        x = x + (h1 @ p["w_fc2"] + p["b_fc2"])
    return ln(x, lnf_w, lnf_b)


# TODO(synk): fps/knn/scatter_max grouping, DMTet mesh extraction and
# nvdiffrast rendering in Encoder/Decoder have no clean Pallas equivalent;
# only the VisionTransformer core is implemented here.

if __name__ == "__main__":
    key = jax.random.PRNGKey(0)
    kx, kpos, kp = jax.random.split(key, 3)
    x = jax.random.normal(kx, (B, N, DIM), jnp.float32)
    pos = 0.02 * jax.random.normal(kpos, (B, N, DIM), jnp.float32)

    layers, lnf_w, lnf_b = make_params(kp)
    kweights = prepare_kernel_weights(layers, lnf_w, lnf_b)

    out = jax.block_until_ready(vit_forward(x, pos, kweights))
    ref = vit_reference(x, pos, layers, lnf_w, lnf_b)

    assert out.shape == (B, N, DIM)
    max_err = float(jnp.max(jnp.abs(out - ref)))
    assert jnp.allclose(out, ref, atol=1e-3, rtol=1e-3), \
        f"mismatch vs reference (max abs err {max_err})"
    print("KERNEL_OK")
</pallas_src>

<mosaic_0001>
module attributes {stable_mosaic.version = 11 : i64} {
  func.func @vit_kernel(%arg0: i32, %arg1: i32, %arg2: memref<1x8x48xf32, #tpu.memory_space<vmem>>, %arg3: memref<1x8x48xf32, #tpu.memory_space<vmem>>, %arg4: memref<1x8x48xf32, #tpu.memory_space<vmem>>, %arg5: memref<1x1x144xf32, #tpu.memory_space<vmem>>, %arg6: memref<1x48x144xf32, #tpu.memory_space<vmem>>, %arg7: memref<1x48x48xf32, #tpu.memory_space<vmem>>, %arg8: memref<1x48x192xf32, #tpu.memory_space<vmem>>, %arg9: memref<1x1x192xf32, #tpu.memory_space<vmem>>, %arg10: memref<1x192x48xf32, #tpu.memory_space<vmem>>, %arg11: memref<2x48xf32, #tpu.memory_space<vmem>>, %arg12: memref<1x8x48xf32, #tpu.memory_space<vmem>>) attributes {dimension_semantics = [#tpu.dimension_semantics<parallel>, #tpu.dimension_semantics<arbitrary>], iteration_bounds = array<i64: 2, 6>, scalar_prefetch = 0 : i64, scratch_operands = 0 : i64, tpu.core_type = #tpu.core_type<tc>, window_params = [{transform_indices = @transform_0, window_bounds = array<i64: 1, 8, 48>}, {transform_indices = @transform_1, window_bounds = array<i64: 1, 8, 48>}, {transform_indices = @transform_2, window_bounds = array<i64: 1, 8, 48>}, {transform_indices = @transform_3, window_bounds = array<i64: 1, 1, 144>}, {transform_indices = @transform_4, window_bounds = array<i64: 1, 48, 144>}, {transform_indices = @transform_5, window_bounds = array<i64: 1, 48, 48>}, {transform_indices = @transform_6, window_bounds = array<i64: 1, 48, 192>}, {transform_indices = @transform_7, window_bounds = array<i64: 1, 1, 192>}, {transform_indices = @transform_8, window_bounds = array<i64: 1, 192, 48>}, {pipeline_mode = #tpu.pipeline_mode<synchronous>, transform_indices = @transform_9, window_bounds = array<i64: 2, 48>}, {transform_indices = @transform_10, window_bounds = array<i64: 1, 8, 48>}]} {
    %c0_i32 = arith.constant 0 : i32
    %0 = arith.cmpi eq, %arg1, %c0_i32 : i32
    %1 = arith.extui %0 : i1 to i32
    %c0_i32_0 = arith.constant 0 : i32
    %2 = arith.cmpi ne, %1, %c0_i32_0 : i32
    scf.if %2 {
      %c0_59 = arith.constant 0 : index
      %c0_60 = arith.constant 0 : index
      %c0_61 = arith.constant 0 : index
      %192 = vector.load %arg2[%c0_59, %c0_60, %c0_61] : memref<1x8x48xf32, #tpu.memory_space<vmem>>, vector<1x8x48xf32>
      %c0_62 = arith.constant 0 : index
      %c0_63 = arith.constant 0 : index
      %c0_64 = arith.constant 0 : index
      %193 = vector.load %arg3[%c0_62, %c0_63, %c0_64] : memref<1x8x48xf32, #tpu.memory_space<vmem>>, vector<1x8x48xf32>
      %194 = arith.addf %192, %193 : vector<1x8x48xf32>
      %c0_65 = arith.constant 0 : index
      %c0_66 = arith.constant 0 : index
      %c0_67 = arith.constant 0 : index
      %195 = vector.load %arg12[%c0_65, %c0_66, %c0_67] : memref<1x8x48xf32, #tpu.memory_space<vmem>>, vector<1x8x48xf32>
      tpu.vector_store %arg12[%c0_65, %c0_66, %c0_67], %194 {strides = array<i32>} : memref<1x8x48xf32, #tpu.memory_space<vmem>>, vector<1x8x48xf32>,
    } else {
    }
    %c0 = arith.constant 0 : index
    %c0_1 = arith.constant 0 : index
    %c0_2 = arith.constant 0 : index
    %3 = vector.load %arg12[%c0, %c0_1, %c0_2] : memref<1x8x48xf32, #tpu.memory_space<vmem>>, vector<1x8x48xf32>
    %4 = vector.shape_cast %3 : vector<1x8x48xf32> to vector<8x48xf32>
    %c0_3 = arith.constant 0 : index
    %c0_4 = arith.constant 0 : index
    %c0_5 = arith.constant 0 : index
    %5 = vector.load %arg4[%c0_3, %c0_4, %c0_5] : memref<1x8x48xf32, #tpu.memory_space<vmem>>, vector<1x8x48xf32>
    %6 = vector.shape_cast %5 : vector<1x8x48xf32> to vector<8x48xf32>
    %7 = vector.extract_strided_slice %6 {offsets = [0, 0], sizes = [1, 48], strides = [1, 1]} : vector<8x48xf32> to vector<1x48xf32>
    %8 = vector.extract_strided_slice %6 {offsets = [1, 0], sizes = [1, 48], strides = [1, 1]} : vector<8x48xf32> to vector<1x48xf32>
    %9 = vector.extract_strided_slice %6 {offsets = [2, 0], sizes = [1, 48], strides = [1, 1]} : vector<8x48xf32> to vector<1x48xf32>
    %10 = vector.extract_strided_slice %6 {offsets = [3, 0], sizes = [1, 48], strides = [1, 1]} : vector<8x48xf32> to vector<1x48xf32>
    %11 = vector.extract_strided_slice %6 {offsets = [4, 0], sizes = [1, 48], strides = [1, 1]} : vector<8x48xf32> to vector<1x48xf32>
    %12 = vector.extract_strided_slice %6 {offsets = [5, 0], sizes = [1, 48], strides = [1, 1]} : vector<8x48xf32> to vector<1x48xf32>
    %cst = arith.constant dense<0.000000e+00> : vector<8xf32>
    %13 = vector.multi_reduction <add>, %4, %cst [1] : vector<8x48xf32> to vector<8xf32>
    %14 = vector.shape_cast %13 : vector<8xf32> to vector<8x1xf32>
    %cst_6 = arith.constant 4.800000e+01 : f32
    %15 = vector.broadcast %cst_6 : f32 to vector<8x1xf32>
    %16 = arith.divf %14, %15 : vector<8x1xf32>
    %17 = vector.broadcast %16 : vector<8x1xf32> to vector<8x48xf32>
    %18 = arith.subf %4, %17 : vector<8x48xf32>
    %19 = arith.mulf %18, %18 : vector<8x48xf32>
    %cst_7 = arith.constant dense<0.000000e+00> : vector<8xf32>
    %20 = vector.multi_reduction <add>, %19, %cst_7 [1] : vector<8x48xf32> to vector<8xf32>
    %21 = vector.shape_cast %20 : vector<8xf32> to vector<8x1xf32>
    %cst_8 = arith.constant 4.800000e+01 : f32
    %22 = vector.broadcast %cst_8 : f32 to vector<8x1xf32>
    %23 = arith.divf %21, %22 : vector<8x1xf32>
    %cst_9 = arith.constant 9.99999997E-7 : f32
    %24 = vector.broadcast %cst_9 : f32 to vector<8x1xf32>
    %25 = arith.addf %23, %24 : vector<8x1xf32>
    %26 = math.rsqrt %25 : vector<8x1xf32>
    %27 = vector.broadcast %26 : vector<8x1xf32> to vector<8x48xf32>
    %28 = arith.mulf %18, %27 : vector<8x48xf32>
    %29 = vector.broadcast %7 : vector<1x48xf32> to vector<8x48xf32>
    %30 = arith.mulf %28, %29 : vector<8x48xf32>
    %31 = vector.broadcast %8 : vector<1x48xf32> to vector<8x48xf32>
    %32 = arith.addf %30, %31 : vector<8x48xf32>
    %c0_10 = arith.constant 0 : index
    %c0_11 = arith.constant 0 : index
    %c0_12 = arith.constant 0 : index
    %33 = vector.load %arg6[%c0_10, %c0_11, %c0_12] : memref<1x48x144xf32, #tpu.memory_space<vmem>>, vector<1x48x144xf32>
    %34 = vector.shape_cast %33 : vector<1x48x144xf32> to vector<48x144xf32>
    %cst_13 = arith.constant dense<0.000000e+00> : vector<8x144xf32>
    %35 = tpu.matmul %32, %34, %cst_13 {dimension_numbers = #tpu.dot_dimension_numbers<[1], [0], [0], [1], [0, 0, 1, 1], [], []>} : vector<8x48xf32>, vector<48x144xf32>, vector<8x144xf32> -> vector<8x144xf32>
    %c0_14 = arith.constant 0 : index
    %c0_15 = arith.constant 0 : index
    %c0_16 = arith.constant 0 : index
    %36 = vector.load %arg5[%c0_14, %c0_15, %c0_16] : memref<1x1x144xf32, #tpu.memory_space<vmem>>, vector<1x1x144xf32>
    %37 = vector.shape_cast %36 : vector<1x1x144xf32> to vector<1x144xf32>
    %38 = vector.broadcast %37 : vector<1x144xf32> to vector<8x144xf32>
    %39 = arith.addf %35, %38 : vector<8x144xf32>
    %40 = vector.extract_strided_slice %39 {offsets = [0, 0], sizes = [8, 48], strides = [1, 1]} : vector<8x144xf32> to vector<8x48xf32>
    %41 = vector.extract_strided_slice %39 {offsets = [0, 48], sizes = [8, 48], strides = [1, 1]} : vector<8x144xf32> to vector<8x48xf32>
    %42 = vector.extract_strided_slice %39 {offsets = [0, 96], sizes = [8, 48], strides = [1, 1]} : vector<8x144xf32> to vector<8x48xf32>
    %43 = vector.extract_strided_slice %40 {offsets = [0, 0], sizes = [8, 8], strides = [1, 1]} : vector<8x48xf32> to vector<8x8xf32>
    %44 = vector.extract_strided_slice %40 {offsets = [0, 8], sizes = [8, 8], strides = [1, 1]} : vector<8x48xf32> to vector<8x8xf32>
    %45 = vector.extract_strided_slice %40 {offsets = [0, 16], sizes = [8, 8], strides = [1, 1]} : vector<8x48xf32> to vector<8x8xf32>
    %46 = vector.extract_strided_slice %40 {offsets = [0, 24], sizes = [8, 8], strides = [1, 1]} : vector<8x48xf32> to vector<8x8xf32>
    %47 = vector.extract_strided_slice %40 {offsets = [0, 32], sizes = [8, 8], strides = [1, 1]} : vector<8x48xf32> to vector<8x8xf32>
    %48 = vector.extract_strided_slice %40 {offsets = [0, 40], sizes = [8, 8], strides = [1, 1]} : vector<8x48xf32> to vector<8x8xf32>
    %49 = vector.shape_cast %43 : vector<8x8xf32> to vector<1x8x8xf32>
    %50 = vector.shape_cast %44 : vector<8x8xf32> to vector<1x8x8xf32>
    %51 = vector.shape_cast %45 : vector<8x8xf32> to vector<1x8x8xf32>
    %52 = vector.shape_cast %46 : vector<8x8xf32> to vector<1x8x8xf32>
    %53 = vector.shape_cast %47 : vector<8x8xf32> to vector<1x8x8xf32>
    %54 = vector.shape_cast %48 : vector<8x8xf32> to vector<1x8x8xf32>
    %55 = tpu.concatenate %49, %50, %51, %52, %53, %54 in 0 : vector<1x8x8xf32>, vector<1x8x8xf32>, vector<1x8x8xf32>, vector<1x8x8xf32>, vector<1x8x8xf32>, vector<1x8x8xf32> -> vector<6x8x8xf32>
    %56 = vector.extract_strided_slice %41 {offsets = [0, 0], sizes = [8, 8], strides = [1, 1]} : vector<8x48xf32> to vector<8x8xf32>
    %57 = vector.extract_strided_slice %41 {offsets = [0, 8], sizes = [8, 8], strides = [1, 1]} : vector<8x48xf32> to vector<8x8xf32>
    %58 = vector.extract_strided_slice %41 {offsets = [0, 16], sizes = [8, 8], strides = [1, 1]} : vector<8x48xf32> to vector<8x8xf32>
    %59 = vector.extract_strided_slice %41 {offsets = [0, 24], sizes = [8, 8], strides = [1, 1]} : vector<8x48xf32> to vector<8x8xf32>
    %60 = vector.extract_strided_slice %41 {offsets = [0, 32], sizes = [8, 8], strides = [1, 1]} : vector<8x48xf32> to vector<8x8xf32>
    %61 = vector.extract_strided_slice %41 {offsets = [0, 40], sizes = [8, 8], strides = [1, 1]} : vector<8x48xf32> to vector<8x8xf32>
    %62 = vector.shape_cast %56 : vector<8x8xf32> to vector<1x8x8xf32>
    %63 = vector.shape_cast %57 : vector<8x8xf32> to vector<1x8x8xf32>
    %64 = vector.shape_cast %58 : vector<8x8xf32> to vector<1x8x8xf32>
    %65 = vector.shape_cast %59 : vector<8x8xf32> to vector<1x8x8xf32>
    %66 = vector.shape_cast %60 : vector<8x8xf32> to vector<1x8x8xf32>
    %67 = vector.shape_cast %61 : vector<8x8xf32> to vector<1x8x8xf32>
    %68 = tpu.concatenate %62, %63, %64, %65, %66, %67 in 0 : vector<1x8x8xf32>, vector<1x8x8xf32>, vector<1x8x8xf32>, vector<1x8x8xf32>, vector<1x8x8xf32>, vector<1x8x8xf32> -> vector<6x8x8xf32>
    %69 = vector.extract_strided_slice %42 {offsets = [0, 0], sizes = [8, 8], strides = [1, 1]} : vector<8x48xf32> to vector<8x8xf32>
    %70 = vector.extract_strided_slice %42 {offsets = [0, 8], sizes = [8, 8], strides = [1, 1]} : vector<8x48xf32> to vector<8x8xf32>
    %71 = vector.extract_strided_slice %42 {offsets = [0, 16], sizes = [8, 8], strides = [1, 1]} : vector<8x48xf32> to vector<8x8xf32>
    %72 = vector.extract_strided_slice %42 {offsets = [0, 24], sizes = [8, 8], strides = [1, 1]} : vector<8x48xf32> to vector<8x8xf32>
    %73 = vector.extract_strided_slice %42 {offsets = [0, 32], sizes = [8, 8], strides = [1, 1]} : vector<8x48xf32> to vector<8x8xf32>
    %74 = vector.extract_strided_slice %42 {offsets = [0, 40], sizes = [8, 8], strides = [1, 1]} : vector<8x48xf32> to vector<8x8xf32>
    %75 = vector.shape_cast %69 : vector<8x8xf32> to vector<1x8x8xf32>
    %76 = vector.shape_cast %70 : vector<8x8xf32> to vector<1x8x8xf32>
    %77 = vector.shape_cast %71 : vector<8x8xf32> to vector<1x8x8xf32>
    %78 = vector.shape_cast %72 : vector<8x8xf32> to vector<1x8x8xf32>
    %79 = vector.shape_cast %73 : vector<8x8xf32> to vector<1x8x8xf32>
    %80 = vector.shape_cast %74 : vector<8x8xf32> to vector<1x8x8xf32>
    %81 = tpu.concatenate %75, %76, %77, %78, %79, %80 in 0 : vector<1x8x8xf32>, vector<1x8x8xf32>, vector<1x8x8xf32>, vector<1x8x8xf32>, vector<1x8x8xf32>, vector<1x8x8xf32> -> vector<6x8x8xf32>
    "tpu.trace_start"() <{level = 10 : i32, message = "hid,hjd->hij"}> : () -> ()
    %cst_17 = arith.constant dense<0.000000e+00> : vector<6x8x8xf32>
    %82 = tpu.matmul %55, %68, %cst_17 {dimension_numbers = #tpu.dot_dimension_numbers<[2], [2], [1], [1], [0, 0, 0, 1, 1, 1], [0], [0]>} : vector<6x8x8xf32>, vector<6x8x8xf32>, vector<6x8x8xf32> -> vector<6x8x8xf32>
    "tpu.trace_stop"() : () -> ()
    %cst_18 = arith.constant dense<0xFF800000> : vector<6x8xf32>
    %83 = vector.multi_reduction <maximumf>, %82, %cst_18 [2] : vector<6x8x8xf32> to vector<6x8xf32>
    %84 = vector.shape_cast %83 : vector<6x8xf32> to vector<6x8x1xf32>
    %85 = vector.broadcast %84 : vector<6x8x1xf32> to vector<6x8x8xf32>
    %86 = arith.subf %82, %85 : vector<6x8x8xf32>
    %87 = math.exp %86 : vector<6x8x8xf32>
    %cst_19 = arith.constant dense<0.000000e+00> : vector<6x8xf32>
    %88 = vector.multi_reduction <add>, %87, %cst_19 [2] : vector<6x8x8xf32> to vector<6x8xf32>
    %89 = vector.shape_cast %88 : vector<6x8xf32> to vector<6x8x1xf32>
    %90 = tpu.reciprocal %89 : vector<6x8x1xf32> -> vector<6x8x1xf32>
    %91 = vector.broadcast %90 : vector<6x8x1xf32> to vector<6x8x8xf32>
    %92 = arith.mulf %87, %91 : vector<6x8x8xf32>
    "tpu.trace_start"() <{level = 10 : i32, message = "hij,hjd->hid"}> : () -> ()
    %cst_20 = arith.constant dense<0.000000e+00> : vector<6x8x8xf32>
    %93 = tpu.matmul %92, %81, %cst_20 {dimension_numbers = #tpu.dot_dimension_numbers<[2], [1], [1], [2], [0, 0, 0, 1, 1, 2], [0], [0]>} : vector<6x8x8xf32>, vector<6x8x8xf32>, vector<6x8x8xf32> -> vector<6x8x8xf32>
    "tpu.trace_stop"() : () -> ()
    %94 = vector.extract_strided_slice %93 {offsets = [0, 0, 0], sizes = [1, 8, 8], strides = [1, 1, 1]} : vector<6x8x8xf32> to vector<1x8x8xf32>
    %95 = vector.shape_cast %94 : vector<1x8x8xf32> to vector<8x8xf32>
    %96 = vector.extract_strided_slice %93 {offsets = [1, 0, 0], sizes = [1, 8, 8], strides = [1, 1, 1]} : vector<6x8x8xf32> to vector<1x8x8xf32>
    %97 = vector.shape_cast %96 : vector<1x8x8xf32> to vector<8x8xf32>
    %98 = vector.extract_strided_slice %93 {offsets = [2, 0, 0], sizes = [1, 8, 8], strides = [1, 1, 1]} : vector<6x8x8xf32> to vector<1x8x8xf32>
    %99 = vector.shape_cast %98 : vector<1x8x8xf32> to vector<8x8xf32>
    %100 = vector.extract_strided_slice %93 {offsets = [3, 0, 0], sizes = [1, 8, 8], strides = [1, 1, 1]} : vector<6x8x8xf32> to vector<1x8x8xf32>
    %101 = vector.shape_cast %100 : vector<1x8x8xf32> to vector<8x8xf32>
    %102 = vector.extract_strided_slice %93 {offsets = [4, 0, 0], sizes = [1, 8, 8], strides = [1, 1, 1]} : vector<6x8x8xf32> to vector<1x8x8xf32>
    %103 = vector.shape_cast %102 : vector<1x8x8xf32> to vector<8x8xf32>
    %104 = vector.extract_strided_slice %93 {offsets = [5, 0, 0], sizes = [1, 8, 8], strides = [1, 1, 1]} : vector<6x8x8xf32> to vector<1x8x8xf32>
    %105 = vector.shape_cast %104 : vector<1x8x8xf32> to vector<8x8xf32>
    %106 = tpu.concatenate %95, %97, %99, %101, %103, %105 in 1 : vector<8x8xf32>, vector<8x8xf32>, vector<8x8xf32>, vector<8x8xf32>, vector<8x8xf32>, vector<8x8xf32> -> vector<8x48xf32>
    %c0_21 = arith.constant 0 : index
    %c0_22 = arith.constant 0 : index
    %c0_23 = arith.constant 0 : index
    %107 = vector.load %arg7[%c0_21, %c0_22, %c0_23] : memref<1x48x48xf32, #tpu.memory_space<vmem>>, vector<1x48x48xf32>
    %108 = vector.shape_cast %107 : vector<1x48x48xf32> to vector<48x48xf32>
    %cst_24 = arith.constant dense<0.000000e+00> : vector<8x48xf32>
    %109 = tpu.matmul %106, %108, %cst_24 {dimension_numbers = #tpu.dot_dimension_numbers<[1], [0], [0], [1], [0, 0, 1, 1], [], []>} : vector<8x48xf32>, vector<48x48xf32>, vector<8x48xf32> -> vector<8x48xf32>
    %110 = vector.broadcast %9 : vector<1x48xf32> to vector<8x48xf32>
    %111 = arith.addf %109, %110 : vector<8x48xf32>
    %112 = arith.addf %4, %111 : vector<8x48xf32>
    %cst_25 = arith.constant dense<0.000000e+00> : vector<8xf32>
    %113 = vector.multi_reduction <add>, %112, %cst_25 [1] : vector<8x48xf32> to vector<8xf32>
    %114 = vector.shape_cast %113 : vector<8xf32> to vector<8x1xf32>
    %cst_26 = arith.constant 4.800000e+01 : f32
    %115 = vector.broadcast %cst_26 : f32 to vector<8x1xf32>
    %116 = arith.divf %114, %115 : vector<8x1xf32>
    %117 = vector.broadcast %116 : vector<8x1xf32> to vector<8x48xf32>
    %118 = arith.subf %112, %117 : vector<8x48xf32>
    %119 = arith.mulf %118, %118 : vector<8x48xf32>
    %cst_27 = arith.constant dense<0.000000e+00> : vector<8xf32>
    %120 = vector.multi_reduction <add>, %119, %cst_27 [1] : vector<8x48xf32> to vector<8xf32>
    %121 = vector.shape_cast %120 : vector<8xf32> to vector<8x1xf32>
    %cst_28 = arith.constant 4.800000e+01 : f32
    %122 = vector.broadcast %cst_28 : f32 to vector<8x1xf32>
    %123 = arith.divf %121, %122 : vector<8x1xf32>
    %cst_29 = arith.constant 9.99999997E-7 : f32
    %124 = vector.broadcast %cst_29 : f32 to vector<8x1xf32>
    %125 = arith.addf %123, %124 : vector<8x1xf32>
    %126 = math.rsqrt %125 : vector<8x1xf32>
    %127 = vector.broadcast %126 : vector<8x1xf32> to vector<8x48xf32>
    %128 = arith.mulf %118, %127 : vector<8x48xf32>
    %129 = vector.broadcast %10 : vector<1x48xf32> to vector<8x48xf32>
    %130 = arith.mulf %128, %129 : vector<8x48xf32>
    %131 = vector.broadcast %11 : vector<1x48xf32> to vector<8x48xf32>
    %132 = arith.addf %130, %131 : vector<8x48xf32>
    %c0_30 = arith.constant 0 : index
    %c0_31 = arith.constant 0 : index
    %c0_32 = arith.constant 0 : index
    %133 = vector.load %arg8[%c0_30, %c0_31, %c0_32] : memref<1x48x192xf32, #tpu.memory_space<vmem>>, vector<1x48x192xf32>
    %134 = vector.shape_cast %133 : vector<1x48x192xf32> to vector<48x192xf32>
    %cst_33 = arith.constant dense<0.000000e+00> : vector<8x192xf32>
    %135 = tpu.matmul %132, %134, %cst_33 {dimension_numbers = #tpu.dot_dimension_numbers<[1], [0], [0], [1], [0, 0, 1, 1], [], []>} : vector<8x48xf32>, vector<48x192xf32>, vector<8x192xf32> -> vector<8x192xf32>
    %c0_34 = arith.constant 0 : index
    %c0_35 = arith.constant 0 : index
    %c0_36 = arith.constant 0 : index
    %136 = vector.load %arg9[%c0_34, %c0_35, %c0_36] : memref<1x1x192xf32, #tpu.memory_space<vmem>>, vector<1x1x192xf32>
    %137 = vector.shape_cast %136 : vector<1x1x192xf32> to vector<1x192xf32>
    %138 = vector.broadcast %137 : vector<1x192xf32> to vector<8x192xf32>
    %139 = arith.addf %135, %138 : vector<8x192xf32>
    %cst_37 = arith.constant 5.000000e-01 : f32
    %140 = vector.broadcast %cst_37 : f32 to vector<8x192xf32>
    %141 = arith.mulf %140, %139 : vector<8x192xf32>
    %cst_38 = arith.constant 0.707106769 : f32
    %142 = vector.broadcast %cst_38 : f32 to vector<8x192xf32>
    %143 = arith.mulf %139, %142 : vector<8x192xf32>
    %144 = math.absf %143 : vector<8x192xf32>
    %cst_39 = arith.constant 0.327591091 : f32
    %145 = vector.broadcast %cst_39 : f32 to vector<8x192xf32>
    %146 = arith.mulf %145, %144 : vector<8x192xf32>
    %cst_40 = arith.constant 1.000000e+00 : f32
    %147 = vector.broadcast %cst_40 : f32 to vector<8x192xf32>
    %148 = arith.addf %147, %146 : vector<8x192xf32>
    %cst_41 = arith.constant 1.000000e+00 : f32
    %149 = vector.broadcast %cst_41 : f32 to vector<8x192xf32>
    %150 = arith.divf %149, %148 : vector<8x192xf32>
    %cst_42 = arith.constant 1.06140542 : f32
    %151 = vector.broadcast %cst_42 : f32 to vector<8x192xf32>
    %152 = arith.mulf %151, %150 : vector<8x192xf32>
    %cst_43 = arith.constant -1.45315206 : f32
    %153 = vector.broadcast %cst_43 : f32 to vector<8x192xf32>
    %154 = arith.addf %152, %153 : vector<8x192xf32>
    %155 = arith.mulf %154, %150 : vector<8x192xf32>
    %cst_44 = arith.constant 1.42141378 : f32
    %156 = vector.broadcast %cst_44 : f32 to vector<8x192xf32>
    %157 = arith.addf %155, %156 : vector<8x192xf32>
    %158 = arith.mulf %157, %150 : vector<8x192xf32>
    %cst_45 = arith.constant -0.284496725 : f32
    %159 = vector.broadcast %cst_45 : f32 to vector<8x192xf32>
    %160 = arith.addf %158, %159 : vector<8x192xf32>
    %161 = arith.mulf %160, %150 : vector<8x192xf32>
    %cst_46 = arith.constant 0.254829586 : f32
    %162 = vector.broadcast %cst_46 : f32 to vector<8x192xf32>
    %163 = arith.addf %161, %162 : vector<8x192xf32>
    %164 = arith.mulf %163, %150 : vector<8x192xf32>
    %cst_47 = arith.constant 0.000000e+00 : f32
    %165 = vector.broadcast %cst_47 : f32 to vector<8x192xf32>
    %166 = arith.subf %165, %144 : vector<8x192xf32>
    %167 = arith.mulf %166, %144 : vector<8x192xf32>
    %168 = math.exp %167 : vector<8x192xf32>
    %169 = arith.mulf %164, %168 : vector<8x192xf32>
    %cst_48 = arith.constant 1.000000e+00 : f32
    %170 = vector.broadcast %cst_48 : f32 to vector<8x192xf32>
    %171 = arith.subf %170, %169 : vector<8x192xf32>
    %cst_49 = arith.constant 0.000000e+00 : f32
    %172 = vector.broadcast %cst_49 : f32 to vector<8x192xf32>
    %173 = arith.cmpf oge, %143, %172 : vector<8x192xf32>
    %cst_50 = arith.constant 0.000000e+00 : f32
    %174 = vector.broadcast %cst_50 : f32 to vector<8x192xf32>
    %175 = arith.subf %174, %171 : vector<8x192xf32>
    %176 = arith.select %173, %171, %175 : vector<8x192xi1>, vector<8x192xf32>
    %cst_51 = arith.constant 1.000000e+00 : f32
    %177 = vector.broadcast %cst_51 : f32 to vector<8x192xf32>
    %178 = arith.addf %177, %176 : vector<8x192xf32>
    %179 = arith.mulf %141, %178 : vector<8x192xf32>
    %c0_52 = arith.constant 0 : index
    %c0_53 = arith.constant 0 : index
    %c0_54 = arith.constant 0 : index
    %180 = vector.load %arg10[%c0_52, %c0_53, %c0_54] : memref<1x192x48xf32, #tpu.memory_space<vmem>>, vector<1x192x48xf32>
    %181 = vector.shape_cast %180 : vector<1x192x48xf32> to vector<192x48xf32>
    %cst_55 = arith.constant dense<0.000000e+00> : vector<8x48xf32>
    %182 = tpu.matmul %179, %181, %cst_55 {dimension_numbers = #tpu.dot_dimension_numbers<[1], [0], [0], [1], [0, 0, 1, 1], [], []>} : vector<8x192xf32>, vector<192x48xf32>, vector<8x48xf32> -> vector<8x48xf32>
    %183 = vector.broadcast %12 : vector<1x48xf32> to vector<8x48xf32>
    %184 = arith.addf %182, %183 : vector<8x48xf32>
    %185 = arith.addf %112, %184 : vector<8x48xf32>
    %c5_i32 = arith.constant 5 : i32
    %186 = arith.cmpi slt, %arg1, %c5_i32 : i32
    %187 = arith.extui %186 : i1 to i32
    %c0_i32_56 = arith.constant 0 : i32
    %188 = arith.cmpi ne, %187, %c0_i32_56 : i32
    scf.if %188 {
      %c0_59 = arith.constant 0 : index
      %c0_60 = arith.constant 0 : index
      %c0_61 = arith.constant 0 : index
      %192 = vector.load %arg12[%c0_59, %c0_60, %c0_61] : memref<1x8x48xf32, #tpu.memory_space<vmem>>, vector<1x8x48xf32>
      %193 = vector.shape_cast %192 : vector<1x8x48xf32> to vector<8x48xf32>
      %194 = vector.shape_cast %185 : vector<8x48xf32> to vector<1x8x48xf32>
      tpu.vector_store %arg12[%c0_59, %c0_60, %c0_61], %194 {strides = array<i32>} : memref<1x8x48xf32, #tpu.memory_space<vmem>>, vector<1x8x48xf32>,
    } else {
    }
    %c5_i32_57 = arith.constant 5 : i32
    %189 = arith.cmpi eq, %arg1, %c5_i32_57 : i32
    %190 = arith.extui %189 : i1 to i32
    %c0_i32_58 = arith.constant 0 : i32
    %191 = arith.cmpi ne, %190, %c0_i32_58 : i32
    scf.if %191 {
      %c0_59 = arith.constant 0 : index
      %c0_60 = arith.constant 0 : index
      %192 = vector.load %arg11[%c0_59, %c0_60] : memref<2x48xf32, #tpu.memory_space<vmem>>, vector<1x48xf32>
      %c1 = arith.constant 1 : index
      %c0_61 = arith.constant 0 : index
      %193 = vector.load %arg11[%c1, %c0_61] : memref<2x48xf32, #tpu.memory_space<vmem>>, vector<1x48xf32>
      %cst_62 = arith.constant dense<0.000000e+00> : vector<8xf32>
      %194 = vector.multi_reduction <add>, %185, %cst_62 [1] : vector<8x48xf32> to vector<8xf32>
      %195 = vector.shape_cast %194 : vector<8xf32> to vector<8x1xf32>
      %cst_63 = arith.constant 4.800000e+01 : f32
      %196 = vector.broadcast %cst_63 : f32 to vector<8x1xf32>
      %197 = arith.divf %195, %196 : vector<8x1xf32>
      %198 = vector.broadcast %197 : vector<8x1xf32> to vector<8x48xf32>
      %199 = arith.subf %185, %198 : vector<8x48xf32>
      %200 = arith.mulf %199, %199 : vector<8x48xf32>
      %cst_64 = arith.constant dense<0.000000e+00> : vector<8xf32>
      %201 = vector.multi_reduction <add>, %200, %cst_64 [1] : vector<8x48xf32> to vector<8xf32>
      %202 = vector.shape_cast %201 : vector<8xf32> to vector<8x1xf32>
      %cst_65 = arith.constant 4.800000e+01 : f32
      %203 = vector.broadcast %cst_65 : f32 to vector<8x1xf32>
      %204 = arith.divf %202, %203 : vector<8x1xf32>
      %cst_66 = arith.constant 9.99999997E-7 : f32
      %205 = vector.broadcast %cst_66 : f32 to vector<8x1xf32>
      %206 = arith.addf %204, %205 : vector<8x1xf32>
      %207 = math.rsqrt %206 : vector<8x1xf32>
      %208 = vector.broadcast %207 : vector<8x1xf32> to vector<8x48xf32>
      %209 = arith.mulf %199, %208 : vector<8x48xf32>
      %210 = vector.broadcast %192 : vector<1x48xf32> to vector<8x48xf32>
      %211 = arith.mulf %209, %210 : vector<8x48xf32>
      %212 = vector.broadcast %193 : vector<1x48xf32> to vector<8x48xf32>
      %213 = arith.addf %211, %212 : vector<8x48xf32>
      %c0_67 = arith.constant 0 : index
      %c0_68 = arith.constant 0 : index
      %c0_69 = arith.constant 0 : index
      %214 = vector.load %arg12[%c0_67, %c0_68, %c0_69] : memref<1x8x48xf32, #tpu.memory_space<vmem>>, vector<1x8x48xf32>
      %215 = vector.shape_cast %214 : vector<1x8x48xf32> to vector<8x48xf32>
      %216 = vector.shape_cast %213 : vector<8x48xf32> to vector<1x8x48xf32>
      tpu.vector_store %arg12[%c0_67, %c0_68, %c0_69], %216 {strides = array<i32>} : memref<1x8x48xf32, #tpu.memory_space<vmem>>, vector<1x8x48xf32>,
    } else {
    }
    return
  }
  func.func @transform_0(%arg0: i32, %arg1: i32) -> (i32, i32, i32) {
    %c0_i32 = arith.constant 0 : i32
    %c0_i32_0 = arith.constant 0 : i32
    %c0_i32_1 = arith.constant 0 : i32
    return %arg0, %c0_i32, %c0_i32_0 : i32, i32, i32
  }
  func.func @transform_1(%arg0: i32, %arg1: i32) -> (i32, i32, i32) {
    %c0_i32 = arith.constant 0 : i32
    %c0_i32_0 = arith.constant 0 : i32
    %c0_i32_1 = arith.constant 0 : i32
    return %arg0, %c0_i32, %c0_i32_0 : i32, i32, i32
  }
  func.func @transform_2(%arg0: i32, %arg1: i32) -> (i32, i32, i32) {
    %c0_i32 = arith.constant 0 : i32
    %c0_i32_0 = arith.constant 0 : i32
    %c0_i32_1 = arith.constant 0 : i32
    return %arg1, %c0_i32, %c0_i32_0 : i32, i32, i32
  }
  func.func @transform_3(%arg0: i32, %arg1: i32) -> (i32, i32, i32) {
    %c0_i32 = arith.constant 0 : i32
    %c0_i32_0 = arith.constant 0 : i32
    %c0_i32_1 = arith.constant 0 : i32
    return %arg1, %c0_i32, %c0_i32_0 : i32, i32, i32
  }
  func.func @transform_4(%arg0: i32, %arg1: i32) -> (i32, i32, i32) {
    %c0_i32 = arith.constant 0 : i32
    %c0_i32_0 = arith.constant 0 : i32
    %c0_i32_1 = arith.constant 0 : i32
    return %arg1, %c0_i32, %c0_i32_0 : i32, i32, i32
  }
  func.func @transform_5(%arg0: i32, %arg1: i32) -> (i32, i32, i32) {
    %c0_i32 = arith.constant 0 : i32
    %c0_i32_0 = arith.constant 0 : i32
    %c0_i32_1 = arith.constant 0 : i32
    return %arg1, %c0_i32, %c0_i32_0 : i32, i32, i32
  }
  func.func @transform_6(%arg0: i32, %arg1: i32) -> (i32, i32, i32) {
    %c0_i32 = arith.constant 0 : i32
    %c0_i32_0 = arith.constant 0 : i32
    %c0_i32_1 = arith.constant 0 : i32
    return %arg1, %c0_i32, %c0_i32_0 : i32, i32, i32
  }
  func.func @transform_7(%arg0: i32, %arg1: i32) -> (i32, i32, i32) {
    %c0_i32 = arith.constant 0 : i32
    %c0_i32_0 = arith.constant 0 : i32
    %c0_i32_1 = arith.constant 0 : i32
    return %arg1, %c0_i32, %c0_i32_0 : i32, i32, i32
  }
  func.func @transform_8(%arg0: i32, %arg1: i32) -> (i32, i32, i32) {
    %c0_i32 = arith.constant 0 : i32
    %c0_i32_0 = arith.constant 0 : i32
    %c0_i32_1 = arith.constant 0 : i32
    return %arg1, %c0_i32, %c0_i32_0 : i32, i32, i32
  }
  func.func @transform_9(%arg0: i32, %arg1: i32) -> (i32, i32) {
    %c0_i32 = arith.constant 0 : i32
    %c0_i32_0 = arith.constant 0 : i32
    %c0_i32_1 = arith.constant 0 : i32
    return %c0_i32, %c0_i32_0 : i32, i32
  }
  func.func @transform_10(%arg0: i32, %arg1: i32) -> (i32, i32, i32) {
    %c0_i32 = arith.constant 0 : i32
    %c0_i32_0 = arith.constant 0 : i32
    %c0_i32_1 = arith.constant 0 : i32
    return %arg0, %c0_i32, %c0_i32_0 : i32, i32, i32
  }
}

</mosaic_0001>

<llo_original>
// kernel: vit_forward.1
$region0: #{vit_forward.1}
  #allocation0 [shape = 'u32[]', space=smem, size = 0x4, offset = 0x4, fixed_abs, tag = 'smem constant byte address 0x4 - core index']
  #allocation1 [shape = 'u32[144,128]{1,0:T(1,128)}', space=vmem, size = 0x12000, scoped, tag = 'internal scratch']
  %s0 = inlined_call_operand.vmem [shape: f32[2,8,48], index: 0, kind: input, shape index: {}]
  %s1 = inlined_call_operand.vmem [shape: f32[2,8,48], index: 1, kind: input, shape index: {}]
  %s2 = inlined_call_operand.vmem [shape: f32[6,8,48], index: 2, kind: input, shape index: {}]
  %s3 = inlined_call_operand.vmem [shape: f32[6,1,144], index: 3, kind: input, shape index: {}]
  %s4 = inlined_call_operand.vmem [shape: f32[6,48,144], index: 4, kind: input, shape index: {}]
  %s5 = inlined_call_operand.vmem [shape: f32[6,48,48], index: 5, kind: input, shape index: {}]
  %s6 = inlined_call_operand.vmem [shape: f32[6,48,192], index: 6, kind: input, shape index: {}]
  %s7 = inlined_call_operand.vmem [shape: f32[6,1,192], index: 7, kind: input, shape index: {}]
  %s8 = inlined_call_operand.vmem [shape: f32[6,192,48], index: 8, kind: input, shape index: {}]
  %s9 = inlined_call_operand.vmem [shape: f32[2,48], index: 9, kind: input, shape index: {}]
  %s10 = inlined_call_operand.hbm [shape: f32[2,8,48], index: 10, kind: output, shape index: {}]
  %s11 = sld [smem:[#allocation0]]
  $region85: #{vit_forward.1} parent=0
    _
  %s13 = ssub.s32 1, %s11
  %s14 = scalar_select 0, %s13, %s11
  $region1: #{vit_forward.1} parent=0
    #allocation2 [shape = 'u8[8192]{0}', space=vmem, size = 0x2000, scoped, tag = 'output window, operand 0']
    #allocation3 [shape = 's32[2]{0}', space=sflag, size = 0x8, scoped, tag = 'scoped memory for vit_forward.1']
    %15 = vsyncpa [#allocation3], 0
    %s16 = scalar_lea.sflag [#allocation3], 1
    %17 = vsyncpa %s16, 0
    loop: start=0, step=1, limit=14
    $region2: #{vit_forward.1} parent=1 // loop_pre_header
      _
    $region3: #{vit_forward.1} parent=1 // loop_header
      %s19 = sphi 0, %s23
      %p20 = scmp.ge.s32.totalorder %s19, 14
      %s26 = sphi 0, %s38
      %s27 = sphi 0, %s34
      %s28 = sphi 0, %s26
      %s29 = sphi 0, %s27
      %s30 = sphi 0, %s28
      %s31 = sphi 0, %s29
      %s41 = sphi 0, %s43
      %s44 = sphi 0, %s41
      %s45 = sphi 0, %s44
      %s61 = sphi 0, %s45
      %s67 = sphi 0, %s69
      %s70 = sphi 0, %s67
      %s71 = sphi 0, %s70
      %s87 = sphi 0, %s71
      %s93 = sphi 0, %s95
      %s96 = sphi 0, %s93
      %s97 = sphi 0, %s96
      %s113 = sphi 0, %s97
      %s119 = sphi 0, %s121
      %s122 = sphi 0, %s119
      %s123 = sphi 0, %s122
      %s139 = sphi 0, %s123
      %s145 = sphi 0, %s147
      %s148 = sphi 0, %s145
      %s149 = sphi 0, %s148
      %s165 = sphi 0, %s149
      %s171 = sphi 0, %s173
      %s174 = sphi 0, %s171
      %s175 = sphi 0, %s174
      %s191 = sphi 0, %s175
      %s197 = sphi 0, %s199
      %s200 = sphi 0, %s197
      %s201 = sphi 0, %s200
      %s217 = sphi 0, %s201
      %s223 = sphi 0, %s225
      %s226 = sphi 0, %s223
      %s227 = sphi 0, %s226
      %s243 = sphi 0, %s227
      %s249 = sphi 0, %s251
      %s252 = sphi 0, %s249
      %s253 = sphi 0, %s252
      %s269 = sphi 0, %s253
      %s273 = sphi 0, %s273
      %s275 = sphi 0, %s273
      %s276 = sphi 0, %s275
      %s290 = sphi 0, %s276
      %s296 = sphi 0, %s298
      %s299 = sphi 0, %s296
      %s300 = sphi 0, %s299
      %s316 = sphi 0, %s300
    $region4: #{vit_forward.1} parent=1 // loop_header_branch
      %22 = sbr.rel (%p20) target = $region8
    $region5: #{vit_forward.1} parent=1 // loop_body
      %s24 = ssub.s32 %s19, 1
      %s25 = ssub.s32 %s19, 2
      %s32 = sadd.s32 1, %s27
      %p33 = scmp.ge.s32.totalorder %s32, 6
      %s34 = scalar_select %p33, 0, %s32
      %s35 = sadd.s32 1, %s26
      %s36 = scalar_select %p33, %s35, %s26
      %p37 = scmp.ge.s32.totalorder %s36, 2
      %s38 = scalar_select %p37, 0, %s36
      %s39 = ssub.s32 %s26, %s38
      %p40 = scmp.eq.s32.totalorder %s39, 0
      %s42 = sadd.s32 %s41, 1
      %s43 = scalar_select %p40, %s41, %s42
      %p46 = pneg %p40
      %p47 = scmp.eq.s32.totalorder %s19, 11
      %p48 = por %p46, %p47
      %p49 = scmp.ne.s32.totalorder %s41, %s44
      %p50 = scmp.eq.s32.totalorder %s19, 0
      %p51 = por %p49, %p50
      %p52 = scmp.ne.s32.totalorder %s41, %s44
      %p53 = scmp.eq.s32.totalorder %s24, 11
      %p54 = por %p52, %p53
      %p55 = scmp.ne.s32.totalorder %s44, %s45
      %p56 = scmp.eq.s32.totalorder %s24, 0
      %p57 = por %p55, %p56
      %p58 = scmp.ne.s32.totalorder %s44, %s45
      %p59 = scmp.eq.s32.totalorder %s25, 11
      %p60 = por %p58, %p59
      %p62 = scmp.ne.s32.totalorder %s45, %s61
      %p63 = scmp.eq.s32.totalorder %s25, 0
      %p64 = por %p62, %p63
      %s65 = ssub.s32 %s26, %s38
      %p66 = scmp.eq.s32.totalorder %s65, 0
      %s68 = sadd.s32 %s67, 1
      %s69 = scalar_select %p66, %s67, %s68
      %p72 = pneg %p66
      %p73 = scmp.eq.s32.totalorder %s19, 11
      %p74 = por %p72, %p73
      %p75 = scmp.ne.s32.totalorder %s67, %s70
      %p76 = scmp.eq.s32.totalorder %s19, 0
      %p77 = por %p75, %p76
      %p78 = scmp.ne.s32.totalorder %s67, %s70
      %p79 = scmp.eq.s32.totalorder %s24, 11
      %p80 = por %p78, %p79
      %p81 = scmp.ne.s32.totalorder %s70, %s71
      %p82 = scmp.eq.s32.totalorder %s24, 0
      %p83 = por %p81, %p82
      %p84 = scmp.ne.s32.totalorder %s70, %s71
      %p85 = scmp.eq.s32.totalorder %s25, 11
      %p86 = por %p84, %p85
      %p88 = scmp.ne.s32.totalorder %s71, %s87
      %p89 = scmp.eq.s32.totalorder %s25, 0
      %p90 = por %p88, %p89
      %s91 = ssub.s32 %s27, %s34
      %p92 = scmp.eq.s32.totalorder %s91, 0
      %s94 = sadd.s32 %s93, 1
      %s95 = scalar_select %p92, %s93, %s94
      %p98 = pneg %p92
      %p99 = scmp.eq.s32.totalorder %s19, 11
      %p100 = por %p98, %p99
      %p101 = scmp.ne.s32.totalorder %s93, %s96
      %p102 = scmp.eq.s32.totalorder %s19, 0
      %p103 = por %p101, %p102
      %p104 = scmp.ne.s32.totalorder %s93, %s96
      %p105 = scmp.eq.s32.totalorder %s24, 11
      %p106 = por %p104, %p105
      %p107 = scmp.ne.s32.totalorder %s96, %s97
      %p108 = scmp.eq.s32.totalorder %s24, 0
      %p109 = por %p107, %p108
      %p110 = scmp.ne.s32.totalorder %s96, %s97
      %p111 = scmp.eq.s32.totalorder %s25, 11
      %p112 = por %p110, %p111
      %p114 = scmp.ne.s32.totalorder %s97, %s113
      %p115 = scmp.eq.s32.totalorder %s25, 0
      %p116 = por %p114, %p115
      %s117 = ssub.s32 %s27, %s34
      %p118 = scmp.eq.s32.totalorder %s117, 0
      %s120 = sadd.s32 %s119, 1
      %s121 = scalar_select %p118, %s119, %s120
      %p124 = pneg %p118
      %p125 = scmp.eq.s32.totalorder %s19, 11
      %p126 = por %p124, %p125
      %p127 = scmp.ne.s32.totalorder %s119, %s122
      %p128 = scmp.eq.s32.totalorder %s19, 0
      %p129 = por %p127, %p128
      %p130 = scmp.ne.s32.totalorder %s119, %s122
      %p131 = scmp.eq.s32.totalorder %s24, 11
      %p132 = por %p130, %p131
      %p133 = scmp.ne.s32.totalorder %s122, %s123
      %p134 = scmp.eq.s32.totalorder %s24, 0
      %p135 = por %p133, %p134
      %p136 = scmp.ne.s32.totalorder %s122, %s123
      %p137 = scmp.eq.s32.totalorder %s25, 11
      %p138 = por %p136, %p137
      %p140 = scmp.ne.s32.totalorder %s123, %s139
      %p141 = scmp.eq.s32.totalorder %s25, 0
      %p142 = por %p140, %p141
      %s143 = ssub.s32 %s27, %s34
      %p144 = scmp.eq.s32.totalorder %s143, 0
      %s146 = sadd.s32 %s145, 1
      %s147 = scalar_select %p144, %s145, %s146
      %p150 = pneg %p144
      %p151 = scmp.eq.s32.totalorder %s19, 11
      %p152 = por %p150, %p151
      %p153 = scmp.ne.s32.totalorder %s145, %s148
      %p154 = scmp.eq.s32.totalorder %s19, 0
      %p155 = por %p153, %p154
      %p156 = scmp.ne.s32.totalorder %s145, %s148
      %p157 = scmp.eq.s32.totalorder %s24, 11
      %p158 = por %p156, %p157
      %p159 = scmp.ne.s32.totalorder %s148, %s149
      %p160 = scmp.eq.s32.totalorder %s24, 0
      %p161 = por %p159, %p160
      %p162 = scmp.ne.s32.totalorder %s148, %s149
      %p163 = scmp.eq.s32.totalorder %s25, 11
      %p164 = por %p162, %p163
      %p166 = scmp.ne.s32.totalorder %s149, %s165
      %p167 = scmp.eq.s32.totalorder %s25, 0
      %p168 = por %p166, %p167
      %s169 = ssub.s32 %s27, %s34
      %p170 = scmp.eq.s32.totalorder %s169, 0
      %s172 = sadd.s32 %s171, 1
      %s173 = scalar_select %p170, %s171, %s172
      %p176 = pneg %p170
      %p177 = scmp.eq.s32.totalorder %s19, 11
      %p178 = por %p176, %p177
      %p179 = scmp.ne.s32.totalorder %s171, %s174
      %p180 = scmp.eq.s32.totalorder %s19, 0
      %p181 = por %p179, %p180
      %p182 = scmp.ne.s32.totalorder %s171, %s174
      %p183 = scmp.eq.s32.totalorder %s24, 11
      %p184 = por %p182, %p183
      %p185 = scmp.ne.s32.totalorder %s174, %s175
      %p186 = scmp.eq.s32.totalorder %s24, 0
      %p187 = por %p185, %p186
      %p188 = scmp.ne.s32.totalorder %s174, %s175
      %p189 = scmp.eq.s32.totalorder %s25, 11
      %p190 = por %p188, %p189
      %p192 = scmp.ne.s32.totalorder %s175, %s191
      %p193 = scmp.eq.s32.totalorder %s25, 0
      %p194 = por %p192, %p193
      %s195 = ssub.s32 %s27, %s34
      %p196 = scmp.eq.s32.totalorder %s195, 0
      %s198 = sadd.s32 %s197, 1
      %s199 = scalar_select %p196, %s197, %s198
      %p202 = pneg %p196
      %p203 = scmp.eq.s32.totalorder %s19, 11
      %p204 = por %p202, %p203
      %p205 = scmp.ne.s32.totalorder %s197, %s200
      %p206 = scmp.eq.s32.totalorder %s19, 0
      %p207 = por %p205, %p206
      %p208 = scmp.ne.s32.totalorder %s197, %s200
      %p209 = scmp.eq.s32.totalorder %s24, 11
      %p210 = por %p208, %p209
      %p211 = scmp.ne.s32.totalorder %s200, %s201
      %p212 = scmp.eq.s32.totalorder %s24, 0
      %p213 = por %p211, %p212
      %p214 = scmp.ne.s32.totalorder %s200, %s201
      %p215 = scmp.eq.s32.totalorder %s25, 11
      %p216 = por %p214, %p215
      %p218 = scmp.ne.s32.totalorder %s201, %s217
      %p219 = scmp.eq.s32.totalorder %s25, 0
      %p220 = por %p218, %p219
      %s221 = ssub.s32 %s27, %s34
      %p222 = scmp.eq.s32.totalorder %s221, 0
      %s224 = sadd.s32 %s223, 1
      %s225 = scalar_select %p222, %s223, %s224
      %p228 = pneg %p222
      %p229 = scmp.eq.s32.totalorder %s19, 11
      %p230 = por %p228, %p229
      %p231 = scmp.ne.s32.totalorder %s223, %s226
      %p232 = scmp.eq.s32.totalorder %s19, 0
      %p233 = por %p231, %p232
      %p234 = scmp.ne.s32.totalorder %s223, %s226
      %p235 = scmp.eq.s32.totalorder %s24, 11
      %p236 = por %p234, %p235
      %p237 = scmp.ne.s32.totalorder %s226, %s227
      %p238 = scmp.eq.s32.totalorder %s24, 0
      %p239 = por %p237, %p238
      %p240 = scmp.ne.s32.totalorder %s226, %s227
      %p241 = scmp.eq.s32.totalorder %s25, 11
      %p242 = por %p240, %p241
      %p244 = scmp.ne.s32.totalorder %s227, %s243
      %p245 = scmp.eq.s32.totalorder %s25, 0
      %p246 = por %p244, %p245
      %s247 = ssub.s32 %s27, %s34
      %p248 = scmp.eq.s32.totalorder %s247, 0
      %s250 = sadd.s32 %s249, 1
      %s251 = scalar_select %p248, %s249, %s250
      %p254 = pneg %p248
      %p255 = scmp.eq.s32.totalorder %s19, 11
      %p256 = por %p254, %p255
      %p257 = scmp.ne.s32.totalorder %s249, %s252
      %p258 = scmp.eq.s32.totalorder %s19, 0
      %p259 = por %p257, %p258
      %p260 = scmp.ne.s32.totalorder %s249, %s252
      %p261 = scmp.eq.s32.totalorder %s24, 11
      %p262 = por %p260, %p261
      %p263 = scmp.ne.s32.totalorder %s252, %s253
      %p264 = scmp.eq.s32.totalorder %s24, 0
      %p265 = por %p263, %p264
      %p266 = scmp.ne.s32.totalorder %s252, %s253
      %p267 = scmp.eq.s32.totalorder %s25, 11
      %p268 = por %p266, %p267
      %p270 = scmp.ne.s32.totalorder %s253, %s269
      %p271 = scmp.eq.s32.totalorder %s25, 0
      %p272 = por %p270, %p271
      %s274 = sadd.s32 %s273, 1
      %p277 = scmp.eq.s32.totalorder %s19, 11
      %p278 = scmp.ne.s32.totalorder %s273, %s275
      %p279 = scmp.eq.s32.totalorder %s19, 0
      %p280 = por %p278, %p279
      %p281 = scmp.ne.s32.totalorder %s273, %s275
      %p282 = scmp.eq.s32.totalorder %s24, 11
      %p283 = por %p281, %p282
      %p284 = scmp.ne.s32.totalorder %s275, %s276
      %p285 = scmp.eq.s32.totalorder %s24, 0
      %p286 = por %p284, %p285
      %p287 = scmp.ne.s32.totalorder %s275, %s276
      %p288 = scmp.eq.s32.totalorder %s25, 11
      %p289 = por %p287, %p288
      %p291 = scmp.ne.s32.totalorder %s276, %s290
      %p292 = scmp.eq.s32.totalorder %s25, 0
      %p293 = por %p291, %p292
      %s294 = ssub.s32 %s26, %s38
      %p295 = scmp.eq.s32.totalorder %s294, 0
      %s297 = sadd.s32 %s296, 1
      %s298 = scalar_select %p295, %s296, %s297
      %p301 = pneg %p295
      %p302 = scmp.eq.s32.totalorder %s19, 11
      %p303 = por %p301, %p302
      %p304 = scmp.ne.s32.totalorder %s296, %s299
      %p305 = scmp.eq.s32.totalorder %s19, 0
      %p306 = por %p304, %p305
      %p307 = scmp.ne.s32.totalorder %s296, %s299
      %p308 = scmp.eq.s32.totalorder %s24, 11
      %p309 = por %p307, %p308
      %p310 = scmp.ne.s32.totalorder %s299, %s300
      %p311 = scmp.eq.s32.totalorder %s24, 0
      %p312 = por %p310, %p311
      %p313 = scmp.ne.s32.totalorder %s299, %s300
      %p314 = scmp.eq.s32.totalorder %s25, 11
      %p315 = por %p313, %p314
      %p317 = scmp.ne.s32.totalorder %s300, %s316
      %p318 = scmp.eq.s32.totalorder %s25, 0
      %p319 = por %p317, %p318
      %p320 = scmp.le.s32.totalorder 1, %s19
      %p321 = scmp.lt.s32.totalorder %s19, 13
      %p322 = pnand %p320, %p321
      %p323 = pneg %p322
      // Predicated region
      $region9: #{vit_forward.1} parent=5 // pred_check
        _
      $region10: #{vit_forward.1} parent=5 // pred_check_branch
        %325 = sbr.rel (%p322) target = $region12
      $region11: #{vit_forward.1} parent=5 // pred_region
        %s326 = ssub.s32 %s19, 1
        // Predicated region
        $region13: #{vit_forward.1} parent=11 // pred_check
          %p327 = pneg %p286
        $region14: #{vit_forward.1} parent=11 // pred_check_branch
          %329 = sbr.rel (%p327) target = $region16
        $region15: #{vit_forward.1} parent=11 // pred_region
          _
        $region16: #{vit_forward.1} parent=11 // pred_fallthru
          _
      $region12: #{vit_forward.1} parent=5 // pred_fallthru
        _
      %p330 = scmp.lt.s32.totalorder %s19, 12
      // Predicated region
      $region17: #{vit_forward.1} parent=5 // pred_check
        %p331 = pneg %p330
      $region18: #{vit_forward.1} parent=5 // pred_check_branch
        %333 = sbr.rel (%p331) target = $region20
      $region19: #{vit_forward.1} parent=5 // pred_region
        // Predicated region
        $region21: #{vit_forward.1} parent=19 // pred_check
          %p334 = pneg %p51
        $region22: #{vit_forward.1} parent=19 // pred_check_branch
          %336 = sbr.rel (%p334) target = $region24
        $region23: #{vit_forward.1} parent=19 // pred_region
          %p337 = scmp.lt.s32.totalorder %s26, 1
          %s338 = scalar_select %p337, %s26, 1
          %s339 = smul.addr %s338, 8
          %s340 = scalar_lea.vmem %s0, %s339
        $region24: #{vit_forward.1} parent=19 // pred_fallthru
          _
        // Predicated region
        $region25: #{vit_forward.1} parent=19 // pred_check
          %p341 = pneg %p77
        $region26: #{vit_forward.1} parent=19 // pred_check_branch
          %343 = sbr.rel (%p341) target = $region28
        $region27: #{vit_forward.1} parent=19 // pred_region
          %p344 = scmp.lt.s32.totalorder %s26, 1
          %s345 = scalar_select %p344, %s26, 1
          %s346 = smul.addr %s345, 8
          %s347 = scalar_lea.vmem %s1, %s346
        $region28: #{vit_forward.1} parent=19 // pred_fallthru
          _
        // Predicated region
        $region29: #{vit_forward.1} parent=19 // pred_check
          %p348 = pneg %p103
        $region30: #{vit_forward.1} parent=19 // pred_check_branch
          %350 = sbr.rel (%p348) target = $region32
        $region31: #{vit_forward.1} parent=19 // pred_region
          %p351 = scmp.lt.s32.totalorder %s27, 5
          %s352 = scalar_select %p351, %s27, 5
          %s353 = smul.addr %s352, 8
          %s354 = scalar_lea.vmem %s2, %s353
        $region32: #{vit_forward.1} parent=19 // pred_fallthru
          _
        // Predicated region
        $region33: #{vit_forward.1} parent=19 // pred_check
          %p355 = pneg %p129
        $region34: #{vit_forward.1} parent=19 // pred_check_branch
          %357 = sbr.rel (%p355) target = $region36
        $region35: #{vit_forward.1} parent=19 // pred_region
          %p358 = scmp.lt.s32.totalorder %s27, 5
          %s359 = scalar_select %p358, %s27, 5
          %s360 = smul.addr %s359, 2
          %s361 = scalar_lea.vmem %s3, %s360
        $region36: #{vit_forward.1} parent=19 // pred_fallthru
          _
        // Predicated region
        $region37: #{vit_forward.1} parent=19 // pred_check
          %p362 = pneg %p155
        $region38: #{vit_forward.1} parent=19 // pred_check_branch
          %364 = sbr.rel (%p362) target = $region40
        $region39: #{vit_forward.1} parent=19 // pred_region
          %p365 = scmp.lt.s32.totalorder %s27, 5
          %s366 = scalar_select %p365, %s27, 5
          %s367 = smul.addr %s366, 12
          %s368 = smul.addr %s367, 8
          %s369 = scalar_lea.vmem %s4, %s368
        $region40: #{vit_forward.1} parent=19 // pred_fallthru
          _
        // Predicated region
        $region41: #{vit_forward.1} parent=19 // pred_check
          %p370 = pneg %p181
        $region42: #{vit_forward.1} parent=19 // pred_check_branch
          %372 = sbr.rel (%p370) target = $region44
        $region43: #{vit_forward.1} parent=19 // pred_region
          %p373 = scmp.lt.s32.totalorder %s27, 5
          %s374 = scalar_select %p373, %s27, 5
          %s375 = smul.addr %s374, 6
          %s376 = smul.addr %s375, 8
          %s377 = scalar_lea.vmem %s5, %s376
        $region44: #{vit_forward.1} parent=19 // pred_fallthru
          _
        // Predicated region
        $region45: #{vit_forward.1} parent=19 // pred_check
          %p378 = pneg %p207
        $region46: #{vit_forward.1} parent=19 // pred_check_branch
          %380 = sbr.rel (%p378) target = $region48
        $region47: #{vit_forward.1} parent=19 // pred_region
          %p381 = scmp.lt.s32.totalorder %s27, 5
          %s382 = scalar_select %p381, %s27, 5
          %s383 = smul.addr %s382, 12
          %s384 = smul.addr %s383, 8
          %s385 = scalar_lea.vmem %s6, %s384
        $region48: #{vit_forward.1} parent=19 // pred_fallthru
          _
        // Predicated region
        $region49: #{vit_forward.1} parent=19 // pred_check
          %p386 = pneg %p233
        $region50: #{vit_forward.1} parent=19 // pred_check_branch
          %388 = sbr.rel (%p386) target = $region52
        $region51: #{vit_forward.1} parent=19 // pred_region
          %p389 = scmp.lt.s32.totalorder %s27, 5
          %s390 = scalar_select %p389, %s27, 5
          %s391 = smul.addr %s390, 2
          %s392 = scalar_lea.vmem %s7, %s391
        $region52: #{vit_forward.1} parent=19 // pred_fallthru
          _
        // Predicated region
        $region53: #{vit_forward.1} parent=19 // pred_check
          %p393 = pneg %p259
        $region54: #{vit_forward.1} parent=19 // pred_check_branch
          %395 = sbr.rel (%p393) target = $region56
        $region55: #{vit_forward.1} parent=19 // pred_region
          %p396 = scmp.lt.s32.totalorder %s27, 5
          %s397 = scalar_select %p396, %s27, 5
          %s398 = smul.addr %s397, 24
          %s399 = smul.addr %s398, 8
          %s400 = scalar_lea.vmem %s8, %s399
        $region56: #{vit_forward.1} parent=19 // pred_fallthru
          _
      $region20: #{vit_forward.1} parent=5 // pred_fallthru
        _
      %p401 = scmp.le.s32.totalorder 1, %s19
      %p402 = scmp.lt.s32.totalorder %s19, 13
      %p403 = pnand %p401, %p402
      %p404 = pneg %p403
      // Predicated region
      $region57: #{vit_forward.1} parent=5 // pred_check
        _
      $region58: #{vit_forward.1} parent=5 // pred_check_branch
        %406 = sbr.rel (%p403) target = $region60
      $region59: #{vit_forward.1} parent=5 // pred_region
        %s407 = ssub.s32 %s19, 1
        %p408 = scmp.lt.s32.totalorder %s28, 1
        %s409 = scalar_select %p408, %s28, 1
        %s410 = smul.addr %s409, 8
        %s411 = scalar_lea.vmem %s0, %s410
        %p412 = pneg %p57
        %p413 = pneg %p54
        %p414 = scmp.lt.s32.totalorder %s28, 1
        %s415 = scalar_select %p414, %s28, 1
        %s416 = smul.addr %s415, 8
        %s417 = scalar_lea.vmem %s1, %s416
        %p418 = pneg %p83
        %p419 = pneg %p80
        %p420 = scmp.lt.s32.totalorder %s29, 5
        %s421 = scalar_select %p420, %s29, 5
        %s422 = smul.addr %s421, 8
        %s423 = scalar_lea.vmem %s2, %s422
        %p424 = pneg %p109
        %p425 = pneg %p106
        %p426 = scmp.lt.s32.totalorder %s29, 5
        %s427 = scalar_select %p426, %s29, 5
        %s428 = smul.addr %s427, 2
        %s429 = scalar_lea.vmem %s3, %s428
        %p430 = pneg %p135
        %p431 = pneg %p132
        %p432 = scmp.lt.s32.totalorder %s29, 5
        %s433 = scalar_select %p432, %s29, 5
        %s434 = smul.addr %s433, 12
        %s435 = smul.addr %s434, 8
        %s436 = scalar_lea.vmem %s4, %s435
        %p437 = pneg %p161
        %p438 = pneg %p158
        %p439 = scmp.lt.s32.totalorder %s29, 5
        %s440 = scalar_select %p439, %s29, 5
        %s441 = smul.addr %s440, 6
        %s442 = smul.addr %s441, 8
        %s443 = scalar_lea.vmem %s5, %s442
        %p444 = pneg %p187
        %p445 = pneg %p184
        %p446 = scmp.lt.s32.totalorder %s29, 5
        %s447 = scalar_select %p446, %s29, 5
        %s448 = smul.addr %s447, 12
        %s449 = smul.addr %s448, 8
        %s450 = scalar_lea.vmem %s6, %s449
        %p451 = pneg %p213
        %p452 = pneg %p210
        %p453 = scmp.lt.s32.totalorder %s29, 5
        %s454 = scalar_select %p453, %s29, 5
        %s455 = smul.addr %s454, 2
        %s456 = scalar_lea.vmem %s7, %s455
        %p457 = pneg %p239
        %p458 = pneg %p236
        %p459 = scmp.lt.s32.totalorder %s29, 5
        %s460 = scalar_select %p459, %s29, 5
        %s461 = smul.addr %s460, 24
        %s462 = smul.addr %s461, 8
        %s463 = scalar_lea.vmem %s8, %s462
        %p464 = pneg %p265
        %p465 = pneg %p262
        %p466 = pneg %p286
        %p467 = pneg %p283
        %p468 = pneg %p312
        %p469 = pneg %p309
        %s470 = sand.u32 %s299, 1
        %s471 = scalar_lea.sflag [#allocation3], %s470
        %s472 = sand.u32 %s299, 1
        %s473 = smul.addr %s472, 8
        %s474 = scalar_lea.vmem [#allocation2], %s473
        %p475 = scmp.lt.s32.totalorder %s28, 1
        %s476 = scalar_select %p475, %s28, 1
        %s477 = smul.addr %s476, 8
        %s478 = scalar_lea.vmem %s0, %s477
        %p479 = scmp.lt.s32.totalorder %s28, 1
        %s480 = scalar_select %p479, %s28, 1
        %s481 = smul.addr %s480, 8
        %s482 = scalar_lea.vmem %s1, %s481
        %p483 = scmp.lt.s32.totalorder %s29, 5
        %s484 = scalar_select %p483, %s29, 5
        %s485 = smul.addr %s484, 8
        %s486 = scalar_lea.vmem %s2, %s485
        %p487 = scmp.lt.s32.totalorder %s29, 5
        %s488 = scalar_select %p487, %s29, 5
        %s489 = smul.addr %s488, 2
        %s490 = scalar_lea.vmem %s3, %s489
        %p491 = scmp.lt.s32.totalorder %s29, 5
        %s492 = scalar_select %p491, %s29, 5
        %s493 = smul.addr %s492, 12
        %s494 = smul.addr %s493, 8
        %s495 = scalar_lea.vmem %s4, %s494
        %p496 = scmp.lt.s32.totalorder %s29, 5
        %s497 = scalar_select %p496, %s29, 5
        %s498 = smul.addr %s497, 6
        %s499 = smul.addr %s498, 8
        %s500 = scalar_lea.vmem %s5, %s499
        %p501 = scmp.lt.s32.totalorder %s29, 5
        %s502 = scalar_select %p501, %s29, 5
        %s503 = smul.addr %s502, 12
        %s504 = smul.addr %s503, 8
        %s505 = scalar_lea.vmem %s6, %s504
        %p506 = scmp.lt.s32.totalorder %s29, 5
        %s507 = scalar_select %p506, %s29, 5
        %s508 = smul.addr %s507, 2
        %s509 = scalar_lea.vmem %s7, %s508
        %p510 = scmp.lt.s32.totalorder %s29, 5
        %s511 = scalar_select %p510, %s29, 5
        %s512 = smul.addr %s511, 24
        %s513 = smul.addr %s512, 8
        %s514 = scalar_lea.vmem %s8, %s513
        %p515 = scmp.eq.s32.totalorder %s29, 0
        // Predicated region
        $region61: #{vit_forward.1} parent=59 // pred_check
          %p516 = pneg %p515
        $region62: #{vit_forward.1} parent=59 // pred_check_branch
          %518 = sbr.rel (%p516) target = $region64
        $region63: #{vit_forward.1} parent=59 // pred_region
          %v519 = vld [vmem:[%s478] sm:$0xff]
          %v520 = vld [vmem:[%s482] sm:$0xff]
          %v521 = vadd.f32 %v519, %v520
          %vm522 = vcmask 392192
          %523 = vst.msk [vmem:[%s474] sm:$0xff] %vm522, %v521
        $region64: #{vit_forward.1} parent=59 // pred_fallthru
          _
        %v524 = vld [vmem:[%s474] sm:$0xff]
        %v525 = vld [vmem:[%s486] sm:$0xff]
        %vm526 = vcmask 392192
        %v527 = vsel %vm526, %v524, 0.0
        %528 = vadd.xlane.f32.xlu0 %v527
        %v529 = vpop.xlane.xlu0 %528
        %v530 = vrcp.pop 48.0
        %v531 = vmul.f32 %v529, %v530
        %v532 = vsub.f32 %v524, %v531
        %v533 = vmul.f32 %v532, %v532
        %v534 = vsel %vm526, %v533, 0.0
        %535 = vadd.xlane.f32.xlu0 %v534
        %v536 = vpop.xlane.xlu0 %535
        %v537 = vmul.f32 %v536, %v530
        %v538 = vadd.f32 %v537, 1e-06
        %v539 = vrsqrt.pop %v538
        %v540 = vmul.f32 %v532, %v539
        %v541 = vlaneseq
        %v542 = vshrl.u32 %v541, 7
        %v543 = vsub.s32 0, %v542
        %v544 = vrot.slane %v525, %v543
        %v545 = vmul.f32 %v540, %v544
        %v546 = vlaneseq
        %v547 = vshrl.u32 %v546, 7
        %v548 = vsub.s32 1, %v547
        %v549 = vrot.slane %v525, %v548
        %v550 = vadd.f32 %v545, %v549
        %v551 = vld [vmem:[%s495] sm:$0xff]
        %v552 = vld [vmem:[%s495 + $0x8] sm:$0xff]
        %v553 = vld [vmem:[%s495 + $0x10] sm:$0xff]
        %v554 = vld [vmem:[%s495 + $0x18] sm:$0xff]
        %v555 = vld [vmem:[%s495 + $0x20] sm:$0xff]
        %v556 = vld [vmem:[%s495 + $0x28] sm:$0xff]
        %v557 = vld [vmem:[%s495 + $0x30] sm:$0xff]
        %v558 = vld [vmem:[%s495 + $0x38] sm:$0xff]
        %v559 = vld [vmem:[%s495 + $0x40] sm:$0xff]
        %v560 = vld [vmem:[%s495 + $0x48] sm:$0xff]
        %v561 = vld [vmem:[%s495 + $0x50] sm:$0xff]
        %v562 = vld [vmem:[%s495 + $0x58] sm:$0xff]
        %v563 = vld [vmem:[%s490] sm:$0x3]
        %v565 = vlaneseq
        %v566 = vshrl.u32 %v565, 7
        %v567 = vsub.s32 0, %v566
        %v568 = vrot.slane %v563, %v567
        %v569 = vlaneseq
        %v570 = vshrl.u32 %v569, 7
        %v571 = vsub.s32 1, %v570
        %v572 = vrot.slane %v563, %v571
        %v576 = vsel %vm526, %v550, 0
        %578 = vmatprep.subr.mxu0 %v552
        %579 = vmatpush1.msra.mxu0 %v551
        %580 = vmatprep.subr.mxu0 %v554
        %581 = vmatpush1.msra.mxu0 %v553
        %582 = vmatprep.subr.mxu0 %v556
        %583 = vmatpush1.msra.mxu0 %v555
        %584 = vmatprep.subr.mxu0 %v558
        %585 = vmatpush1.msra.mxu0 %v557
        %586 = vmatprep.subr.mxu0 %v560
        %587 = vmatpush1.msra.mxu0 %v559
        %588 = vmatprep.subr.mxu0 %v562
        %589 = vmatpush1.msra.mxu0 %v561
        %590 = vmatprep.subr.mxu0 0.0
        %591 = vmatpush1.msra.mxu0 0.0
        %592 = vmatprep.subr.mxu0 0.0
        %593 = vmatpush1.msra.mxu0 0.0
        %594 = vmatprep.subr.mxu0 0.0
        %595 = vmatpush1.msra.mxu0 0.0
        %596 = vmatprep.subr.mxu0 0.0
        %597 = vmatpush1.msra.mxu0 0.0
        %598 = vmatprep.subr.mxu0 0.0
        %599 = vmatpush1.msra.mxu0 0.0
        %600 = vmatprep.subr.mxu0 0.0
        %601 = vmatpush1.msra.mxu0 0.0
        %602 = vmatprep.subr.mxu0 0.0
        %603 = vmatpush1.msra.mxu0 0.0
        %604 = vmatprep.subr.mxu0 0.0
        %605 = vmatpush1.msra.mxu0 0.0
        %606 = vmatprep.subr.mxu0 0.0
        %607 = vmatpush1.msra.mxu0 0.0
        %608 = vmatprep.subr.mxu0 0.0
        %609 = vmatpush1.msra.mxu0 0.0
        %610 = vmatprep.subr.mxu0 0.0
        %611 = vmatpush1.msra.mxu0 0.0
        %612 = vmatprep.subr.mxu0 0.0
        %613 = vmatpush1.msra.mxu0 0.0
        %614 = vmatprep.subr.mxu0 0.0
        %615 = vmatpush1.msra.mxu0 0.0
        %616 = vmatprep.subr.mxu0 0.0
        %617 = vmatpush1.msra.mxu0 0.0
        %618 = vmatprep.subr.mxu0 0.0
        %619 = vmatpush1.msra.mxu0 0.0
        %620 = vmatprep.subr.mxu0 0.0
        %621 = vmatpush1.msra.mxu0 0.0
        %622 = vmatprep.subr.mxu0 0.0
        %623 = vmatpush1.msra.mxu0 0.0
        %624 = vmatprep.subr.mxu0 0.0
        %625 = vmatpush1.msra.mxu0 0.0
        %626 = vmatprep.subr.mxu0 0.0
        %627 = vmatpush1.msra.mxu0 0.0
        %628 = vmatprep.subr.mxu0 0.0
        %629 = vmatpush1.msra.mxu0 0.0
        %630 = vmatprep.subr.mxu0 0.0
        %631 = vmatpush1.msra.mxu0 0.0
        %632 = vmatprep.subr.mxu0 0.0
        %633 = vmatpush1.msra.mxu0 0.0
        %634 = vmatprep.subr.mxu0 0.0
        %635 = vmatpush1.msra.mxu0 0.0
        %636 = vmatprep.subr.mxu0 0.0
        %637 = vmatpush1.msra.mxu0 0.0
        %638 = vmatprep.subr.mxu0 0.0
        %639 = vmatpush1.msra.mxu0 0.0
        %640 = vmatprep.subr.mxu0 0.0
        %641 = vmatpush1.msra.mxu0 0.0
        %642 = vmatprep.mubr.f32.mxu0 0.0
        %643 = vmatmul.mubr.f32.gmra.mrb[0].mxu0 %v576
        %v644 = vpop.f32.mrb[0].mxu0
        %v645 = vadd.f32 %v568, %v644
        %v646 = vpop.f32.mrb[0].mxu0
        %v647 = vadd.f32 %v572, %v646
        %648 = vdwg.mxu0
        %650 = vrot.lane.b32.xlu0 %v645, 120
        %v651 = vpop.permute.xlu0 %650
        %652 = vrot.lane.b32.xlu0 %v645, 112
        %v653 = vpop.permute.xlu0 %652
        %654 = vrot.lane.b32.xlu0 %v645, 104
        %v655 = vpop.permute.xlu0 %654
        %656 = vrot.lane.b32.xlu0 %v645, 96
        %v657 = vpop.permute.xlu0 %656
        %658 = vrot.lane.b32.xlu0 %v645, 88
        %v659 = vpop.permute.xlu0 %658
        %661 = vrot.lane.b32.xlu0 %v647, 96
        %v662 = vpop.permute.xlu0 %661
        %663 = vrot.lane.b32.xlu0 %v647, 88
        %v664 = vpop.permute.xlu0 %663
        %665 = vrot.lane.b32.xlu0 %v645, 80
        %v666 = vpop.permute.xlu0 %665
        %vm667 = vcmask 64512
        %v668 = vsel %vm667, %v645, 0
        %v670 = vsel %vm667, %v666, 0
        %672 = vmatprep.subr.mxu0 0.0
        %673 = vmatpush1.xpose.msra.mxu0 %v670
        %674 = vmatprep.subr.mxu0 0.0
        %675 = vmatpush1.xpose.msra.mxu0 0.0
        %676 = vmatprep.subr.mxu0 0.0
        %677 = vmatpush1.xpose.msra.mxu0 0.0
        %678 = vmatprep.subr.mxu0 0.0
        %679 = vmatpush1.xpose.msra.mxu0 0.0
        %680 = vmatprep.subr.mxu0 0.0
        %681 = vmatpush1.xpose.msra.mxu0 0.0
        %682 = vmatprep.subr.mxu0 0.0
        %683 = vmatpush1.xpose.msra.mxu0 0.0
        %684 = vmatprep.subr.mxu0 0.0
        %685 = vmatpush1.xpose.msra.mxu0 0.0
        %686 = vmatprep.subr.mxu0 0.0
        %687 = vmatpush1.xpose.msra.mxu0 0.0
        %688 = vmatprep.subr.mxu0 0.0
        %689 = vmatpush1.xpose.msra.mxu0 0.0
        %690 = vmatprep.subr.mxu0 0.0
        %691 = vmatpush1.xpose.msra.mxu0 0.0
        %692 = vmatprep.subr.mxu0 0.0
        %693 = vmatpush1.xpose.msra.mxu0 0.0
        %694 = vmatprep.subr.mxu0 0.0
        %695 = vmatpush1.xpose.msra.mxu0 0.0
        %696 = vmatprep.subr.mxu0 0.0
        %697 = vmatpush1.xpose.msra.mxu0 0.0
        %698 = vmatprep.subr.mxu0 0.0
        %699 = vmatpush1.xpose.msra.mxu0 0.0
        %700 = vmatprep.subr.mxu0 0.0
        %701 = vmatpush1.xpose.msra.mxu0 0.0
        %702 = vmatprep.subr.mxu0 0.0
        %703 = vmatpush1.xpose.msra.mxu0 0.0
        %704 = vmatprep.subr.mxu0 0.0
        %705 = vmatpush1.xpose.msra.mxu0 0.0
        %706 = vmatprep.subr.mxu0 0.0
        %707 = vmatpush1.xpose.msra.mxu0 0.0
        %708 = vmatprep.subr.mxu0 0.0
        %709 = vmatpush1.xpose.msra.mxu0 0.0
        %710 = vmatprep.subr.mxu0 0.0
        %711 = vmatpush1.xpose.msra.mxu0 0.0
        %712 = vmatprep.subr.mxu0 0.0
        %713 = vmatpush1.xpose.msra.mxu0 0.0
        %714 = vmatprep.subr.mxu0 0.0
        %715 = vmatpush1.xpose.msra.mxu0 0.0
        %716 = vmatprep.subr.mxu0 0.0
        %717 = vmatpush1.xpose.msra.mxu0 0.0
        %718 = vmatprep.subr.mxu0 0.0
        %719 = vmatpush1.xpose.msra.mxu0 0.0
        %720 = vmatprep.subr.mxu0 0.0
        %721 = vmatpush1.xpose.msra.mxu0 0.0
        %722 = vmatprep.subr.mxu0 0.0
        %723 = vmatpush1.xpose.msra.mxu0 0.0
        %724 = vmatprep.subr.mxu0 0.0
        %725 = vmatpush1.xpose.msra.mxu0 0.0
        %726 = vmatprep.subr.mxu0 0.0
        %727 = vmatpush1.xpose.msra.mxu0 0.0
        %728 = vmatprep.subr.mxu0 0.0
        %729 = vmatpush1.xpose.msra.mxu0 0.0
        %730 = vmatprep.subr.mxu0 0.0
        %731 = vmatpush1.xpose.msra.mxu0 0.0
        %732 = vmatprep.subr.mxu0 0.0
        %733 = vmatpush1.xpose.msra.mxu0 0.0
        %734 = vmatprep.subr.mxu0 0.0
        %735 = vmatpush1.xpose.msra.mxu0 0.0
        %736 = vmatprep.mubr.f32.mxu0 0.0
        %737 = vmatmul.mubr.f32.gmra.mrb[0].mxu0 %v668
        %v738 = vpop.f32.mrb[0].mxu0
        %v739 = vadd.f32 0.0, %v738
        %v740 = vpop.f32.mrb[0].mxu0
        %741 = vdwg.mxu0
        %742 = vrot.lane.b32.xlu0 %v651, 80
        %v743 = vpop.permute.xlu0 %742
        %v744 = vsel %vm667, %v651, 0
        %v746 = vsel %vm667, %v743, 0
        %748 = vmatprep.subr.mxu0 0.0
        %749 = vmatpush1.xpose.msra.mxu0 %v746
        %750 = vmatprep.subr.mxu0 0.0
        %751 = vmatpush1.xpose.msra.mxu0 0.0
        %752 = vmatprep.subr.mxu0 0.0
        %753 = vmatpush1.xpose.msra.mxu0 0.0
        %754 = vmatprep.subr.mxu0 0.0
        %755 = vmatpush1.xpose.msra.mxu0 0.0
        %756 = vmatprep.subr.mxu0 0.0
        %757 = vmatpush1.xpose.msra.mxu0 0.0
        %758 = vmatprep.subr.mxu0 0.0
        %759 = vmatpush1.xpose.msra.mxu0 0.0
        %760 = vmatprep.subr.mxu0 0.0
        %761 = vmatpush1.xpose.msra.mxu0 0.0
        %762 = vmatprep.subr.mxu0 0.0
        %763 = vmatpush1.xpose.msra.mxu0 0.0
        %764 = vmatprep.subr.mxu0 0.0
        %765 = vmatpush1.xpose.msra.mxu0 0.0
        %766 = vmatprep.subr.mxu0 0.0
        %767 = vmatpush1.xpose.msra.mxu0 0.0
        %768 = vmatprep.subr.mxu0 0.0
        %769 = vmatpush1.xpose.msra.mxu0 0.0
        %770 = vmatprep.subr.mxu0 0.0
        %771 = vmatpush1.xpose.msra.mxu0 0.0
        %772 = vmatprep.subr.mxu0 0.0
        %773 = vmatpush1.xpose.msra.mxu0 0.0
        %774 = vmatprep.subr.mxu0 0.0
        %775 = vmatpush1.xpose.msra.mxu0 0.0
        %776 = vmatprep.subr.mxu0 0.0
        %777 = vmatpush1.xpose.msra.mxu0 0.0
        %778 = vmatprep.subr.mxu0 0.0
        %779 = vmatpush1.xpose.msra.mxu0 0.0
        %780 = vmatprep.subr.mxu0 0.0
        %781 = vmatpush1.xpose.msra.mxu0 0.0
        %782 = vmatprep.subr.mxu0 0.0
        %783 = vmatpush1.xpose.msra.mxu0 0.0
        %784 = vmatprep.subr.mxu0 0.0
        %785 = vmatpush1.xpose.msra.mxu0 0.0
        %786 = vmatprep.subr.mxu0 0.0
        %787 = vmatpush1.xpose.msra.mxu0 0.0
        %788 = vmatprep.subr.mxu0 0.0
        %789 = vmatpush1.xpose.msra.mxu0 0.0
        %790 = vmatprep.subr.mxu0 0.0
        %791 = vmatpush1.xpose.msra.mxu0 0.0
        %792 = vmatprep.subr.mxu0 0.0
        %793 = vmatpush1.xpose.msra.mxu0 0.0
        %794 = vmatprep.subr.mxu0 0.0
        %795 = vmatpush1.xpose.msra.mxu0 0.0
        %796 = vmatprep.subr.mxu0 0.0
        %797 = vmatpush1.xpose.msra.mxu0 0.0
        %798 = vmatprep.subr.mxu0 0.0
        %799 = vmatpush1.xpose.msra.mxu0 0.0
        %800 = vmatprep.subr.mxu0 0.0
        %801 = vmatpush1.xpose.msra.mxu0 0.0
        %802 = vmatprep.subr.mxu0 0.0
        %803 = vmatpush1.xpose.msra.mxu0 0.0
        %804 = vmatprep.subr.mxu0 0.0
        %805 = vmatpush1.xpose.msra.mxu0 0.0
        %806 = vmatprep.subr.mxu0 0.0
        %807 = vmatpush1.xpose.msra.mxu0 0.0
        %808 = vmatprep.subr.mxu0 0.0
        %809 = vmatpush1.xpose.msra.mxu0 0.0
        %810 = vmatprep.subr.mxu0 0.0
        %811 = vmatpush1.xpose.msra.mxu0 0.0
        %812 = vmatprep.mubr.f32.mxu0 0.0
        %813 = vmatmul.mubr.f32.gmra.mrb[0].mxu0 %v744
        %v814 = vpop.f32.mrb[0].mxu0
        %v815 = vadd.f32 0.0, %v814
        %v816 = vpop.f32.mrb[0].mxu0
        %817 = vdwg.mxu0
        %818 = vrot.lane.b32.xlu0 %v653, 80
        %v819 = vpop.permute.xlu0 %818
        %v820 = vsel %vm667, %v653, 0
        %v822 = vsel %vm667, %v819, 0
        %824 = vmatprep.subr.mxu0 0.0
        %825 = vmatpush1.xpose.msra.mxu0 %v822
        %826 = vmatprep.subr.mxu0 0.0
        %827 = vmatpush1.xpose.msra.mxu0 0.0
        %828 = vmatprep.subr.mxu0 0.0
        %829 = vmatpush1.xpose.msra.mxu0 0.0
        %830 = vmatprep.subr.mxu0 0.0
        %831 = vmatpush1.xpose.msra.mxu0 0.0
        %832 = vmatprep.subr.mxu0 0.0
        %833 = vmatpush1.xpose.msra.mxu0 0.0
        %834 = vmatprep.subr.mxu0 0.0
        %835 = vmatpush1.xpose.msra.mxu0 0.0
        %836 = vmatprep.subr.mxu0 0.0
        %837 = vmatpush1.xpose.msra.mxu0 0.0
        %838 = vmatprep.subr.mxu0 0.0
        %839 = vmatpush1.xpose.msra.mxu0 0.0
        %840 = vmatprep.subr.mxu0 0.0
        %841 = vmatpush1.xpose.msra.mxu0 0.0
        %842 = vmatprep.subr.mxu0 0.0
        %843 = vmatpush1.xpose.msra.mxu0 0.0
        %844 = vmatprep.subr.mxu0 0.0
        %845 = vmatpush1.xpose.msra.mxu0 0.0
        %846 = vmatprep.subr.mxu0 0.0
        %847 = vmatpush1.xpose.msra.mxu0 0.0
        %848 = vmatprep.subr.mxu0 0.0
        %849 = vmatpush1.xpose.msra.mxu0 0.0
        %850 = vmatprep.subr.mxu0 0.0
        %851 = vmatpush1.xpose.msra.mxu0 0.0
        %852 = vmatprep.subr.mxu0 0.0
        %853 = vmatpush1.xpose.msra.mxu0 0.0
        %854 = vmatprep.subr.mxu0 0.0
        %855 = vmatpush1.xpose.msra.mxu0 0.0
        %856 = vmatprep.subr.mxu0 0.0
        %857 = vmatpush1.xpose.msra.mxu0 0.0
        %858 = vmatprep.subr.mxu0 0.0
        %859 = vmatpush1.xpose.msra.mxu0 0.0
        %860 = vmatprep.subr.mxu0 0.0
        %861 = vmatpush1.xpose.msra.mxu0 0.0
        %862 = vmatprep.subr.mxu0 0.0
        %863 = vmatpush1.xpose.msra.mxu0 0.0
        %864 = vmatprep.subr.mxu0 0.0
        %865 = vmatpush1.xpose.msra.mxu0 0.0
        %866 = vmatprep.subr.mxu0 0.0
        %867 = vmatpush1.xpose.msra.mxu0 0.0
        %868 = vmatprep.subr.mxu0 0.0
        %869 = vmatpush1.xpose.msra.mxu0 0.0
        %870 = vmatprep.subr.mxu0 0.0
        %871 = vmatpush1.xpose.msra.mxu0 0.0
        %872 = vmatprep.subr.mxu0 0.0
        %873 = vmatpush1.xpose.msra.mxu0 0.0
        %874 = vmatprep.subr.mxu0 0.0
        %875 = vmatpush1.xpose.msra.mxu0 0.0
        %876 = vmatprep.subr.mxu0 0.0
        %877 = vmatpush1.xpose.msra.mxu0 0.0
        %878 = vmatprep.subr.mxu0 0.0
        %879 = vmatpush1.xpose.msra.mxu0 0.0
        %880 = vmatprep.subr.mxu0 0.0
        %881 = vmatpush1.xpose.msra.mxu0 0.0
        %882 = vmatprep.subr.mxu0 0.0
        %883 = vmatpush1.xpose.msra.mxu0 0.0
        %884 = vmatprep.subr.mxu0 0.0
        %885 = vmatpush1.xpose.msra.mxu0 0.0
        %886 = vmatprep.subr.mxu0 0.0
        %887 = vmatpush1.xpose.msra.mxu0 0.0
        %888 = vmatprep.mubr.f32.mxu0 0.0
        %889 = vmatmul.mubr.f32.gmra.mrb[0].mxu0 %v820
        %v890 = vpop.f32.mrb[0].mxu0
        %v891 = vadd.f32 0.0, %v890
        %v892 = vpop.f32.mrb[0].mxu0
        %893 = vdwg.mxu0
        %894 = vrot.lane.b32.xlu0 %v655, 80
        %v895 = vpop.permute.xlu0 %894
        %v896 = vsel %vm667, %v655, 0
        %v898 = vsel %vm667, %v895, 0
        %900 = vmatprep.subr.mxu0 0.0
        %901 = vmatpush1.xpose.msra.mxu0 %v898
        %902 = vmatprep.subr.mxu0 0.0
        %903 = vmatpush1.xpose.msra.mxu0 0.0
        %904 = vmatprep.subr.mxu0 0.0
        %905 = vmatpush1.xpose.msra.mxu0 0.0
        %906 = vmatprep.subr.mxu0 0.0
        %907 = vmatpush1.xpose.msra.mxu0 0.0
        %908 = vmatprep.subr.mxu0 0.0
        %909 = vmatpush1.xpose.msra.mxu0 0.0
        %910 = vmatprep.subr.mxu0 0.0
        %911 = vmatpush1.xpose.msra.mxu0 0.0
        %912 = vmatprep.subr.mxu0 0.0
        %913 = vmatpush1.xpose.msra.mxu0 0.0
        %914 = vmatprep.subr.mxu0 0.0
        %915 = vmatpush1.xpose.msra.mxu0 0.0
        %916 = vmatprep.subr.mxu0 0.0
        %917 = vmatpush1.xpose.msra.mxu0 0.0
        %918 = vmatprep.subr.mxu0 0.0
        %919 = vmatpush1.xpose.msra.mxu0 0.0
        %920 = vmatprep.subr.mxu0 0.0
        %921 = vmatpush1.xpose.msra.mxu0 0.0
        %922 = vmatprep.subr.mxu0 0.0
        %923 = vmatpush1.xpose.msra.mxu0 0.0
        %924 = vmatprep.subr.mxu0 0.0
        %925 = vmatpush1.xpose.msra.mxu0 0.0
        %926 = vmatprep.subr.mxu0 0.0
        %927 = vmatpush1.xpose.msra.mxu0 0.0
        %928 = vmatprep.subr.mxu0 0.0
        %929 = vmatpush1.xpose.msra.mxu0 0.0
        %930 = vmatprep.subr.mxu0 0.0
        %931 = vmatpush1.xpose.msra.mxu0 0.0
        %932 = vmatprep.subr.mxu0 0.0
        %933 = vmatpush1.xpose.msra.mxu0 0.0
        %934 = vmatprep.subr.mxu0 0.0
        %935 = vmatpush1.xpose.msra.mxu0 0.0
        %936 = vmatprep.subr.mxu0 0.0
        %937 = vmatpush1.xpose.msra.mxu0 0.0
        %938 = vmatprep.subr.mxu0 0.0
        %939 = vmatpush1.xpose.msra.mxu0 0.0
        %940 = vmatprep.subr.mxu0 0.0
        %941 = vmatpush1.xpose.msra.mxu0 0.0
        %942 = vmatprep.subr.mxu0 0.0
        %943 = vmatpush1.xpose.msra.mxu0 0.0
        %944 = vmatprep.subr.mxu0 0.0
        %945 = vmatpush1.xpose.msra.mxu0 0.0
        %946 = vmatprep.subr.mxu0 0.0
        %947 = vmatpush1.xpose.msra.mxu0 0.0
        %948 = vmatprep.subr.mxu0 0.0
        %949 = vmatpush1.xpose.msra.mxu0 0.0
        %950 = vmatprep.subr.mxu0 0.0
        %951 = vmatpush1.xpose.msra.mxu0 0.0
        %952 = vmatprep.subr.mxu0 0.0
        %953 = vmatpush1.xpose.msra.mxu0 0.0
        %954 = vmatprep.subr.mxu0 0.0
        %955 = vmatpush1.xpose.msra.mxu0 0.0
        %956 = vmatprep.subr.mxu0 0.0
        %957 = vmatpush1.xpose.msra.mxu0 0.0
        %958 = vmatprep.subr.mxu0 0.0
        %959 = vmatpush1.xpose.msra.mxu0 0.0
        %960 = vmatprep.subr.mxu0 0.0
        %961 = vmatpush1.xpose.msra.mxu0 0.0
        %962 = vmatprep.subr.mxu0 0.0
        %963 = vmatpush1.xpose.msra.mxu0 0.0
        %964 = vmatprep.mubr.f32.mxu0 0.0
        %965 = vmatmul.mubr.f32.gmra.mrb[0].mxu0 %v896
        %v966 = vpop.f32.mrb[0].mxu0
        %v967 = vadd.f32 0.0, %v966
        %v968 = vpop.f32.mrb[0].mxu0
        %969 = vdwg.mxu0
        %970 = vrot.lane.b32.xlu0 %v657, 80
        %v971 = vpop.permute.xlu0 %970
        %v972 = vsel %vm667, %v657, 0
        %v974 = vsel %vm667, %v971, 0
        %976 = vmatprep.subr.mxu0 0.0
        %977 = vmatpush1.xpose.msra.mxu0 %v974
        %978 = vmatprep.subr.mxu0 0.0
        %979 = vmatpush1.xpose.msra.mxu0 0.0
        %980 = vmatprep.subr.mxu0 0.0
        %981 = vmatpush1.xpose.msra.mxu0 0.0
        %982 = vmatprep.subr.mxu0 0.0
        %983 = vmatpush1.xpose.msra.mxu0 0.0
        %984 = vmatprep.subr.mxu0 0.0
        %985 = vmatpush1.xpose.msra.mxu0 0.0
        %986 = vmatprep.subr.mxu0 0.0
        %987 = vmatpush1.xpose.msra.mxu0 0.0
        %988 = vmatprep.subr.mxu0 0.0
        %989 = vmatpush1.xpose.msra.mxu0 0.0
        %990 = vmatprep.subr.mxu0 0.0
        %991 = vmatpush1.xpose.msra.mxu0 0.0
        %992 = vmatprep.subr.mxu0 0.0
        %993 = vmatpush1.xpose.msra.mxu0 0.0
        %994 = vmatprep.subr.mxu0 0.0
        %995 = vmatpush1.xpose.msra.mxu0 0.0
        %996 = vmatprep.subr.mxu0 0.0
        %997 = vmatpush1.xpose.msra.mxu0 0.0
        %998 = vmatprep.subr.mxu0 0.0
        %999 = vmatpush1.xpose.msra.mxu0 0.0
        %1000 = vmatprep.subr.mxu0 0.0
        %1001 = vmatpush1.xpose.msra.mxu0 0.0
        %1002 = vmatprep.subr.mxu0 0.0
        %1003 = vmatpush1.xpose.msra.mxu0 0.0
        %1004 = vmatprep.subr.mxu0 0.0
        %1005 = vmatpush1.xpose.msra.mxu0 0.0
        %1006 = vmatprep.subr.mxu0 0.0
        %1007 = vmatpush1.xpose.msra.mxu0 0.0
        %1008 = vmatprep.subr.mxu0 0.0
        %1009 = vmatpush1.xpose.msra.mxu0 0.0
        %1010 = vmatprep.subr.mxu0 0.0
        %1011 = vmatpush1.xpose.msra.mxu0 0.0
        %1012 = vmatprep.subr.mxu0 0.0
        %1013 = vmatpush1.xpose.msra.mxu0 0.0
        %1014 = vmatprep.subr.mxu0 0.0
        %1015 = vmatpush1.xpose.msra.mxu0 0.0
        %1016 = vmatprep.subr.mxu0 0.0
        %1017 = vmatpush1.xpose.msra.mxu0 0.0
        %1018 = vmatprep.subr.mxu0 0.0
        %1019 = vmatpush1.xpose.msra.mxu0 0.0
        %1020 = vmatprep.subr.mxu0 0.0
        %1021 = vmatpush1.xpose.msra.mxu0 0.0
        %1022 = vmatprep.subr.mxu0 0.0
        %1023 = vmatpush1.xpose.msra.mxu0 0.0
        %1024 = vmatprep.subr.mxu0 0.0
        %1025 = vmatpush1.xpose.msra.mxu0 0.0
        %1026 = vmatprep.subr.mxu0 0.0
        %1027 = vmatpush1.xpose.msra.mxu0 0.0
        %1028 = vmatprep.subr.mxu0 0.0
        %1029 = vmatpush1.xpose.msra.mxu0 0.0
        %1030 = vmatprep.subr.mxu0 0.0
        %1031 = vmatpush1.xpose.msra.mxu0 0.0
        %1032 = vmatprep.subr.mxu0 0.0
        %1033 = vmatpush1.xpose.msra.mxu0 0.0
        %1034 = vmatprep.subr.mxu0 0.0
        %1035 = vmatpush1.xpose.msra.mxu0 0.0
        %1036 = vmatprep.subr.mxu0 0.0
        %1037 = vmatpush1.xpose.msra.mxu0 0.0
        %1038 = vmatprep.subr.mxu0 0.0
        %1039 = vmatpush1.xpose.msra.mxu0 0.0
        %1040 = vmatprep.mubr.f32.mxu0 0.0
        %1041 = vmatmul.mubr.f32.gmra.mrb[0].mxu0 %v972
        %v1042 = vpop.f32.mrb[0].mxu0
        %v1043 = vadd.f32 0.0, %v1042
        %v1044 = vpop.f32.mrb[0].mxu0
        %1045 = vdwg.mxu0
        %1046 = vrot.lane.b32.xlu0 %v659, 80
        %v1047 = vpop.permute.xlu0 %1046
        %v1048 = vsel %vm667, %v659, 0
        %v1050 = vsel %vm667, %v1047, 0
        %1052 = vmatprep.subr.mxu0 0.0
        %1053 = vmatpush1.xpose.msra.mxu0 %v1050
        %1054 = vmatprep.subr.mxu0 0.0
        %1055 = vmatpush1.xpose.msra.mxu0 0.0
        %1056 = vmatprep.subr.mxu0 0.0
        %1057 = vmatpush1.xpose.msra.mxu0 0.0
        %1058 = vmatprep.subr.mxu0 0.0
        %1059 = vmatpush1.xpose.msra.mxu0 0.0
        %1060 = vmatprep.subr.mxu0 0.0
        %1061 = vmatpush1.xpose.msra.mxu0 0.0
        %1062 = vmatprep.subr.mxu0 0.0
        %1063 = vmatpush1.xpose.msra.mxu0 0.0
        %1064 = vmatprep.subr.mxu0 0.0
        %1065 = vmatpush1.xpose.msra.mxu0 0.0
        %1066 = vmatprep.subr.mxu0 0.0
        %1067 = vmatpush1.xpose.msra.mxu0 0.0
        %1068 = vmatprep.subr.mxu0 0.0
        %1069 = vmatpush1.xpose.msra.mxu0 0.0
        %1070 = vmatprep.subr.mxu0 0.0
        %1071 = vmatpush1.xpose.msra.mxu0 0.0
        %1072 = vmatprep.subr.mxu0 0.0
        %1073 = vmatpush1.xpose.msra.mxu0 0.0
        %1074 = vmatprep.subr.mxu0 0.0
        %1075 = vmatpush1.xpose.msra.mxu0 0.0
        %1076 = vmatprep.subr.mxu0 0.0
        %1077 = vmatpush1.xpose.msra.mxu0 0.0
        %1078 = vmatprep.subr.mxu0 0.0
        %1079 = vmatpush1.xpose.msra.mxu0 0.0
        %1080 = vmatprep.subr.mxu0 0.0
        %1081 = vmatpush1.xpose.msra.mxu0 0.0
        %1082 = vmatprep.subr.mxu0 0.0
        %1083 = vmatpush1.xpose.msra.mxu0 0.0
        %1084 = vmatprep.subr.mxu0 0.0
        %1085 = vmatpush1.xpose.msra.mxu0 0.0
        %1086 = vmatprep.subr.mxu0 0.0
        %1087 = vmatpush1.xpose.msra.mxu0 0.0
        %1088 = vmatprep.subr.mxu0 0.0
        %1089 = vmatpush1.xpose.msra.mxu0 0.0
        %1090 = vmatprep.subr.mxu0 0.0
        %1091 = vmatpush1.xpose.msra.mxu0 0.0
        %1092 = vmatprep.subr.mxu0 0.0
        %1093 = vmatpush1.xpose.msra.mxu0 0.0
        %1094 = vmatprep.subr.mxu0 0.0
        %1095 = vmatpush1.xpose.msra.mxu0 0.0
        %1096 = vmatprep.subr.mxu0 0.0
        %1097 = vmatpush1.xpose.msra.mxu0 0.0
        %1098 = vmatprep.subr.mxu0 0.0
        %1099 = vmatpush1.xpose.msra.mxu0 0.0
        %1100 = vmatprep.subr.mxu0 0.0
        %1101 = vmatpush1.xpose.msra.mxu0 0.0
        %1102 = vmatprep.subr.mxu0 0.0
        %1103 = vmatpush1.xpose.msra.mxu0 0.0
        %1104 = vmatprep.subr.mxu0 0.0
        %1105 = vmatpush1.xpose.msra.mxu0 0.0
        %1106 = vmatprep.subr.mxu0 0.0
        %1107 = vmatpush1.xpose.msra.mxu0 0.0
        %1108 = vmatprep.subr.mxu0 0.0
        %1109 = vmatpush1.xpose.msra.mxu0 0.0
        %1110 = vmatprep.subr.mxu0 0.0
        %1111 = vmatpush1.xpose.msra.mxu0 0.0
        %1112 = vmatprep.subr.mxu0 0.0
        %1113 = vmatpush1.xpose.msra.mxu0 0.0
        %1114 = vmatprep.subr.mxu0 0.0
        %1115 = vmatpush1.xpose.msra.mxu0 0.0
        %1116 = vmatprep.mubr.f32.mxu0 0.0
        %1117 = vmatmul.mubr.f32.gmra.mrb[0].mxu0 %v1048
        %v1118 = vpop.f32.mrb[0].mxu0
        %v1119 = vadd.f32 0.0, %v1118
        %v1120 = vpop.f32.mrb[0].mxu0
        %1121 = vdwg.mxu0
        %v1122 = vsel %vm667, %v739, -inf
        %1123 = vmax.xlane.f32.xlu0 %v1122
        %v1124 = vpop.xlane.xlu0 %1123
        %v1125 = vsel %vm667, %v815, -inf
        %1126 = vmax.xlane.f32.xlu0 %v1125
        %v1127 = vpop.xlane.xlu0 %1126
        %v1128 = vsel %vm667, %v891, -inf
        %1129 = vmax.xlane.f32.xlu0 %v1128
        %v1130 = vpop.xlane.xlu0 %1129
        %v1131 = vsel %vm667, %v967, -inf
        %1132 = vmax.xlane.f32.xlu0 %v1131
        %v1133 = vpop.xlane.xlu0 %1132
        %v1134 = vsel %vm667, %v1043, -inf
        %1135 = vmax.xlane.f32.xlu0 %v1134
        %v1136 = vpop.xlane.xlu0 %1135
        %v1137 = vsel %vm667, %v1119, -inf
        %1138 = vmax.xlane.f32.xlu0 %v1137
        %v1139 = vpop.xlane.xlu0 %1138
        %v1140 = vsub.f32 %v739, %v1124
        %v1141 = vsub.f32 %v815, %v1127
        %v1142 = vsub.f32 %v891, %v1130
        %v1143 = vsub.f32 %v967, %v1133
        %v1144 = vsub.f32 %v1043, %v1136
        %v1145 = vsub.f32 %v1119, %v1139
        %v1146 = vmul.f32 %v1140, 1.442695
        %v1147 = vpow.pop %v1146
        %v1148 = vmul.f32 %v1141, 1.442695
        %v1149 = vpow.pop %v1148
        %v1150 = vmul.f32 %v1142, 1.442695
        %v1151 = vpow.pop %v1150
        %v1152 = vmul.f32 %v1143, 1.442695
        %v1153 = vpow.pop %v1152
        %v1154 = vmul.f32 %v1144, 1.442695
        %v1155 = vpow.pop %v1154
        %v1156 = vmul.f32 %v1145, 1.442695
        %v1157 = vpow.pop %v1156
        %v1158 = vsel %vm667, %v1147, 0.0
        %1159 = vadd.xlane.f32.xlu0 %v1158
        %v1160 = vpop.xlane.xlu0 %1159
        %v1161 = vsel %vm667, %v1149, 0.0
        %1162 = vadd.xlane.f32.xlu0 %v1161
        %v1163 = vpop.xlane.xlu0 %1162
        %v1164 = vsel %vm667, %v1151, 0.0
        %1165 = vadd.xlane.f32.xlu0 %v1164
        %v1166 = vpop.xlane.xlu0 %1165
        %v1167 = vsel %vm667, %v1153, 0.0
        %1168 = vadd.xlane.f32.xlu0 %v1167
        %v1169 = vpop.xlane.xlu0 %1168
        %v1170 = vsel %vm667, %v1155, 0.0
        %1171 = vadd.xlane.f32.xlu0 %v1170
        %v1172 = vpop.xlane.xlu0 %1171
        %v1173 = vsel %vm667, %v1157, 0.0
        %1174 = vadd.xlane.f32.xlu0 %v1173
        %v1175 = vpop.xlane.xlu0 %1174
        %v1176 = vrcp.pop %v1160
        %v1177 = vrcp.pop %v1163
        %v1178 = vrcp.pop %v1166
        %v1179 = vrcp.pop %v1169
        %v1180 = vrcp.pop %v1172
        %v1181 = vrcp.pop %v1175
        %v1182 = vmul.f32 %v1147, %v1176
        %v1183 = vmul.f32 %v1149, %v1177
        %v1184 = vmul.f32 %v1151, %v1178
        %v1185 = vmul.f32 %v1153, %v1179
        %v1186 = vmul.f32 %v1155, %v1180
        %v1187 = vmul.f32 %v1157, %v1181
        %1188 = vrot.lane.b32.xlu0 %v645, 32
        %v1189 = vpop.permute.xlu0 %1188
        %v1192 = vsel %vm667, %v1182, 0
        %1194 = vmatprep.subr.mxu0 0.0
        %1195 = vmatpush1.msra.mxu0 %v1189
        %1196 = vmatprep.subr.mxu0 0.0
        %1197 = vmatpush1.msra.mxu0 0.0
        %1198 = vmatprep.subr.mxu0 0.0
        %1199 = vmatpush1.msra.mxu0 0.0
        %1200 = vmatprep.subr.mxu0 0.0
        %1201 = vmatpush1.msra.mxu0 0.0
        %1202 = vmatprep.subr.mxu0 0.0
        %1203 = vmatpush1.msra.mxu0 0.0
        %1204 = vmatprep.subr.mxu0 0.0
        %1205 = vmatpush1.msra.mxu0 0.0
        %1206 = vmatprep.subr.mxu0 0.0
        %1207 = vmatpush1.msra.mxu0 0.0
        %1208 = vmatprep.subr.mxu0 0.0
        %1209 = vmatpush1.msra.mxu0 0.0
        %1210 = vmatprep.subr.mxu0 0.0
        %1211 = vmatpush1.msra.mxu0 0.0
        %1212 = vmatprep.subr.mxu0 0.0
        %1213 = vmatpush1.msra.mxu0 0.0
        %1214 = vmatprep.subr.mxu0 0.0
        %1215 = vmatpush1.msra.mxu0 0.0
        %1216 = vmatprep.subr.mxu0 0.0
        %1217 = vmatpush1.msra.mxu0 0.0
        %1218 = vmatprep.subr.mxu0 0.0
        %1219 = vmatpush1.msra.mxu0 0.0
        %1220 = vmatprep.subr.mxu0 0.0
        %1221 = vmatpush1.msra.mxu0 0.0
        %1222 = vmatprep.subr.mxu0 0.0
        %1223 = vmatpush1.msra.mxu0 0.0
        %1224 = vmatprep.subr.mxu0 0.0
        %1225 = vmatpush1.msra.mxu0 0.0
        %1226 = vmatprep.subr.mxu0 0.0
        %1227 = vmatpush1.msra.mxu0 0.0
        %1228 = vmatprep.subr.mxu0 0.0
        %1229 = vmatpush1.msra.mxu0 0.0
        %1230 = vmatprep.subr.mxu0 0.0
        %1231 = vmatpush1.msra.mxu0 0.0
        %1232 = vmatprep.subr.mxu0 0.0
        %1233 = vmatpush1.msra.mxu0 0.0
        %1234 = vmatprep.subr.mxu0 0.0
        %1235 = vmatpush1.msra.mxu0 0.0
        %1236 = vmatprep.subr.mxu0 0.0
        %1237 = vmatpush1.msra.mxu0 0.0
        %1238 = vmatprep.subr.mxu0 0.0
        %1239 = vmatpush1.msra.mxu0 0.0
        %1240 = vmatprep.subr.mxu0 0.0
        %1241 = vmatpush1.msra.mxu0 0.0
        %1242 = vmatprep.subr.mxu0 0.0
        %1243 = vmatpush1.msra.mxu0 0.0
        %1244 = vmatprep.subr.mxu0 0.0
        %1245 = vmatpush1.msra.mxu0 0.0
        %1246 = vmatprep.subr.mxu0 0.0
        %1247 = vmatpush1.msra.mxu0 0.0
        %1248 = vmatprep.subr.mxu0 0.0
        %1249 = vmatpush1.msra.mxu0 0.0
        %1250 = vmatprep.subr.mxu0 0.0
        %1251 = vmatpush1.msra.mxu0 0.0
        %1252 = vmatprep.subr.mxu0 0.0
        %1253 = vmatpush1.msra.mxu0 0.0
        %1254 = vmatprep.subr.mxu0 0.0
        %1255 = vmatpush1.msra.mxu0 0.0
        %1256 = vmatprep.subr.mxu0 0.0
        %1257 = vmatpush1.msra.mxu0 0.0
        %1258 = vmatprep.mubr.f32.mxu0 0.0
        %1259 = vmatmul.mubr.f32.gmra.mrb[0].mxu0 %v1192
        %v1260 = vpop.f32.mrb[0].mxu0
        %v1261 = vadd.f32 0.0, %v1260
        %v1262 = vpop.f32.mrb[0].mxu0
        %1263 = vdwg.mxu0
        %1264 = vrot.lane.b32.xlu0 %v651, 32
        %v1265 = vpop.permute.xlu0 %1264
        %v1268 = vsel %vm667, %v1183, 0
        %1270 = vmatprep.subr.mxu0 0.0
        %1271 = vmatpush1.msra.mxu0 %v1265
        %1272 = vmatprep.subr.mxu0 0.0
        %1273 = vmatpush1.msra.mxu0 0.0
        %1274 = vmatprep.subr.mxu0 0.0
        %1275 = vmatpush1.msra.mxu0 0.0
        %1276 = vmatprep.subr.mxu0 0.0
        %1277 = vmatpush1.msra.mxu0 0.0
        %1278 = vmatprep.subr.mxu0 0.0
        %1279 = vmatpush1.msra.mxu0 0.0
        %1280 = vmatprep.subr.mxu0 0.0
        %1281 = vmatpush1.msra.mxu0 0.0
        %1282 = vmatprep.subr.mxu0 0.0
        %1283 = vmatpush1.msra.mxu0 0.0
        %1284 = vmatprep.subr.mxu0 0.0
        %1285 = vmatpush1.msra.mxu0 0.0
        %1286 = vmatprep.subr.mxu0 0.0
        %1287 = vmatpush1.msra.mxu0 0.0
        %1288 = vmatprep.subr.mxu0 0.0
        %1289 = vmatpush1.msra.mxu0 0.0
        %1290 = vmatprep.subr.mxu0 0.0
        %1291 = vmatpush1.msra.mxu0 0.0
        %1292 = vmatprep.subr.mxu0 0.0
        %1293 = vmatpush1.msra.mxu0 0.0
        %1294 = vmatprep.subr.mxu0 0.0
        %1295 = vmatpush1.msra.mxu0 0.0
        %1296 = vmatprep.subr.mxu0 0.0
        %1297 = vmatpush1.msra.mxu0 0.0
        %1298 = vmatprep.subr.mxu0 0.0
        %1299 = vmatpush1.msra.mxu0 0.0
        %1300 = vmatprep.subr.mxu0 0.0
        %1301 = vmatpush1.msra.mxu0 0.0
        %1302 = vmatprep.subr.mxu0 0.0
        %1303 = vmatpush1.msra.mxu0 0.0
        %1304 = vmatprep.subr.mxu0 0.0
        %1305 = vmatpush1.msra.mxu0 0.0
        %1306 = vmatprep.subr.mxu0 0.0
        %1307 = vmatpush1.msra.mxu0 0.0
        %1308 = vmatprep.subr.mxu0 0.0
        %1309 = vmatpush1.msra.mxu0 0.0
        %1310 = vmatprep.subr.mxu0 0.0
        %1311 = vmatpush1.msra.mxu0 0.0
        %1312 = vmatprep.subr.mxu0 0.0
        %1313 = vmatpush1.msra.mxu0 0.0
        %1314 = vmatprep.subr.mxu0 0.0
        %1315 = vmatpush1.msra.mxu0 0.0
        %1316 = vmatprep.subr.mxu0 0.0
        %1317 = vmatpush1.msra.mxu0 0.0
        %1318 = vmatprep.subr.mxu0 0.0
        %1319 = vmatpush1.msra.mxu0 0.0
        %1320 = vmatprep.subr.mxu0 0.0
        %1321 = vmatpush1.msra.mxu0 0.0
        %1322 = vmatprep.subr.mxu0 0.0
        %1323 = vmatpush1.msra.mxu0 0.0
        %1324 = vmatprep.subr.mxu0 0.0
        %1325 = vmatpush1.msra.mxu0 0.0
        %1326 = vmatprep.subr.mxu0 0.0
        %1327 = vmatpush1.msra.mxu0 0.0
        %1328 = vmatprep.subr.mxu0 0.0
        %1329 = vmatpush1.msra.mxu0 0.0
        %1330 = vmatprep.subr.mxu0 0.0
        %1331 = vmatpush1.msra.mxu0 0.0
        %1332 = vmatprep.subr.mxu0 0.0
        %1333 = vmatpush1.msra.mxu0 0.0
        %1334 = vmatprep.mubr.f32.mxu0 0.0
        %1335 = vmatmul.mubr.f32.gmra.mrb[0].mxu0 %v1268
        %v1336 = vpop.f32.mrb[0].mxu0
        %v1337 = vadd.f32 0.0, %v1336
        %v1338 = vpop.f32.mrb[0].mxu0
        %1339 = vdwg.mxu0
        %1340 = vrot.lane.b32.xlu0 %v653, 32
        %v1341 = vpop.permute.xlu0 %1340
        %v1344 = vsel %vm667, %v1184, 0
        %1346 = vmatprep.subr.mxu0 0.0
        %1347 = vmatpush1.msra.mxu0 %v1341
        %1348 = vmatprep.subr.mxu0 0.0
        %1349 = vmatpush1.msra.mxu0 0.0
        %1350 = vmatprep.subr.mxu0 0.0
        %1351 = vmatpush1.msra.mxu0 0.0
        %1352 = vmatprep.subr.mxu0 0.0
        %1353 = vmatpush1.msra.mxu0 0.0
        %1354 = vmatprep.subr.mxu0 0.0
        %1355 = vmatpush1.msra.mxu0 0.0
        %1356 = vmatprep.subr.mxu0 0.0
        %1357 = vmatpush1.msra.mxu0 0.0
        %1358 = vmatprep.subr.mxu0 0.0
        %1359 = vmatpush1.msra.mxu0 0.0
        %1360 = vmatprep.subr.mxu0 0.0
        %1361 = vmatpush1.msra.mxu0 0.0
        %1362 = vmatprep.subr.mxu0 0.0
        %1363 = vmatpush1.msra.mxu0 0.0
        %1364 = vmatprep.subr.mxu0 0.0
        %1365 = vmatpush1.msra.mxu0 0.0
        %1366 = vmatprep.subr.mxu0 0.0
        %1367 = vmatpush1.msra.mxu0 0.0
        %1368 = vmatprep.subr.mxu0 0.0
        %1369 = vmatpush1.msra.mxu0 0.0
        %1370 = vmatprep.subr.mxu0 0.0
        %1371 = vmatpush1.msra.mxu0 0.0
        %1372 = vmatprep.subr.mxu0 0.0
        %1373 = vmatpush1.msra.mxu0 0.0
        %1374 = vmatprep.subr.mxu0 0.0
        %1375 = vmatpush1.msra.mxu0 0.0
        %1376 = vmatprep.subr.mxu0 0.0
        %1377 = vmatpush1.msra.mxu0 0.0
        %1378 = vmatprep.subr.mxu0 0.0
        %1379 = vmatpush1.msra.mxu0 0.0
        %1380 = vmatprep.subr.mxu0 0.0
        %1381 = vmatpush1.msra.mxu0 0.0
        %1382 = vmatprep.subr.mxu0 0.0
        %1383 = vmatpush1.msra.mxu0 0.0
        %1384 = vmatprep.subr.mxu0 0.0
        %1385 = vmatpush1.msra.mxu0 0.0
        %1386 = vmatprep.subr.mxu0 0.0
        %1387 = vmatpush1.msra.mxu0 0.0
        %1388 = vmatprep.subr.mxu0 0.0
        %1389 = vmatpush1.msra.mxu0 0.0
        %1390 = vmatprep.subr.mxu0 0.0
        %1391 = vmatpush1.msra.mxu0 0.0
        %1392 = vmatprep.subr.mxu0 0.0
        %1393 = vmatpush1.msra.mxu0 0.0
        %1394 = vmatprep.subr.mxu0 0.0
        %1395 = vmatpush1.msra.mxu0 0.0
        %1396 = vmatprep.subr.mxu0 0.0
        %1397 = vmatpush1.msra.mxu0 0.0
        %1398 = vmatprep.subr.mxu0 0.0
        %1399 = vmatpush1.msra.mxu0 0.0
        %1400 = vmatprep.subr.mxu0 0.0
        %1401 = vmatpush1.msra.mxu0 0.0
        %1402 = vmatprep.subr.mxu0 0.0
        %1403 = vmatpush1.msra.mxu0 0.0
        %1404 = vmatprep.subr.mxu0 0.0
        %1405 = vmatpush1.msra.mxu0 0.0
        %1406 = vmatprep.subr.mxu0 0.0
        %1407 = vmatpush1.msra.mxu0 0.0
        %1408 = vmatprep.subr.mxu0 0.0
        %1409 = vmatpush1.msra.mxu0 0.0
        %1410 = vmatprep.mubr.f32.mxu0 0.0
        %1411 = vmatmul.mubr.f32.gmra.mrb[0].mxu0 %v1344
        %v1412 = vpop.f32.mrb[0].mxu0
        %v1413 = vadd.f32 0.0, %v1412
        %v1414 = vpop.f32.mrb[0].mxu0
        %1415 = vdwg.mxu0
        %1416 = vrot.lane.b32.xlu0 %v655, 32
        %v1417 = vpop.permute.xlu0 %1416
        %v1420 = vsel %vm667, %v1185, 0
        %1422 = vmatprep.subr.mxu0 0.0
        %1423 = vmatpush1.msra.mxu0 %v1417
        %1424 = vmatprep.subr.mxu0 0.0
        %1425 = vmatpush1.msra.mxu0 0.0
        %1426 = vmatprep.subr.mxu0 0.0
        %1427 = vmatpush1.msra.mxu0 0.0
        %1428 = vmatprep.subr.mxu0 0.0
        %1429 = vmatpush1.msra.mxu0 0.0
        %1430 = vmatprep.subr.mxu0 0.0
        %1431 = vmatpush1.msra.mxu0 0.0
        %1432 = vmatprep.subr.mxu0 0.0
        %1433 = vmatpush1.msra.mxu0 0.0
        %1434 = vmatprep.subr.mxu0 0.0
        %1435 = vmatpush1.msra.mxu0 0.0
        %1436 = vmatprep.subr.mxu0 0.0
        %1437 = vmatpush1.msra.mxu0 0.0
        %1438 = vmatprep.subr.mxu0 0.0
        %1439 = vmatpush1.msra.mxu0 0.0
        %1440 = vmatprep.subr.mxu0 0.0
        %1441 = vmatpush1.msra.mxu0 0.0
        %1442 = vmatprep.subr.mxu0 0.0
        %1443 = vmatpush1.msra.mxu0 0.0
        %1444 = vmatprep.subr.mxu0 0.0
        %1445 = vmatpush1.msra.mxu0 0.0
        %1446 = vmatprep.subr.mxu0 0.0
        %1447 = vmatpush1.msra.mxu0 0.0
        %1448 = vmatprep.subr.mxu0 0.0
        %1449 = vmatpush1.msra.mxu0 0.0
        %1450 = vmatprep.subr.mxu0 0.0
        %1451 = vmatpush1.msra.mxu0 0.0
        %1452 = vmatprep.subr.mxu0 0.0
        %1453 = vmatpush1.msra.mxu0 0.0
        %1454 = vmatprep.subr.mxu0 0.0
        %1455 = vmatpush1.msra.mxu0 0.0
        %1456 = vmatprep.subr.mxu0 0.0
        %1457 = vmatpush1.msra.mxu0 0.0
        %1458 = vmatprep.subr.mxu0 0.0
        %1459 = vmatpush1.msra.mxu0 0.0
        %1460 = vmatprep.subr.mxu0 0.0
        %1461 = vmatpush1.msra.mxu0 0.0
        %1462 = vmatprep.subr.mxu0 0.0
        %1463 = vmatpush1.msra.mxu0 0.0
        %1464 = vmatprep.subr.mxu0 0.0
        %1465 = vmatpush1.msra.mxu0 0.0
        %1466 = vmatprep.subr.mxu0 0.0
        %1467 = vmatpush1.msra.mxu0 0.0
        %1468 = vmatprep.subr.mxu0 0.0
        %1469 = vmatpush1.msra.mxu0 0.0
        %1470 = vmatprep.subr.mxu0 0.0
        %1471 = vmatpush1.msra.mxu0 0.0
        %1472 = vmatprep.subr.mxu0 0.0
        %1473 = vmatpush1.msra.mxu0 0.0
        %1474 = vmatprep.subr.mxu0 0.0
        %1475 = vmatpush1.msra.mxu0 0.0
        %1476 = vmatprep.subr.mxu0 0.0
        %1477 = vmatpush1.msra.mxu0 0.0
        %1478 = vmatprep.subr.mxu0 0.0
        %1479 = vmatpush1.msra.mxu0 0.0
        %1480 = vmatprep.subr.mxu0 0.0
        %1481 = vmatpush1.msra.mxu0 0.0
        %1482 = vmatprep.subr.mxu0 0.0
        %1483 = vmatpush1.msra.mxu0 0.0
        %1484 = vmatprep.subr.mxu0 0.0
        %1485 = vmatpush1.msra.mxu0 0.0
        %1486 = vmatprep.mubr.f32.mxu0 0.0
        %1487 = vmatmul.mubr.f32.gmra.mrb[0].mxu0 %v1420
        %v1488 = vpop.f32.mrb[0].mxu0
        %v1489 = vadd.f32 0.0, %v1488
        %v1490 = vpop.f32.mrb[0].mxu0
        %1491 = vdwg.mxu0
        %1492 = vrot.lane.b32.xlu0 %v662, 32
        %v1493 = vpop.permute.xlu0 %1492
        %v1496 = vsel %vm667, %v1186, 0
        %1498 = vmatprep.subr.mxu0 0.0
        %1499 = vmatpush1.msra.mxu0 %v1493
        %1500 = vmatprep.subr.mxu0 0.0
        %1501 = vmatpush1.msra.mxu0 0.0
        %1502 = vmatprep.subr.mxu0 0.0
        %1503 = vmatpush1.msra.mxu0 0.0
        %1504 = vmatprep.subr.mxu0 0.0
        %1505 = vmatpush1.msra.mxu0 0.0
        %1506 = vmatprep.subr.mxu0 0.0
        %1507 = vmatpush1.msra.mxu0 0.0
        %1508 = vmatprep.subr.mxu0 0.0
        %1509 = vmatpush1.msra.mxu0 0.0
        %1510 = vmatprep.subr.mxu0 0.0
        %1511 = vmatpush1.msra.mxu0 0.0
        %1512 = vmatprep.subr.mxu0 0.0
        %1513 = vmatpush1.msra.mxu0 0.0
        %1514 = vmatprep.subr.mxu0 0.0
        %1515 = vmatpush1.msra.mxu0 0.0
        %1516 = vmatprep.subr.mxu0 0.0
        %1517 = vmatpush1.msra.mxu0 0.0
        %1518 = vmatprep.subr.mxu0 0.0
        %1519 = vmatpush1.msra.mxu0 0.0
        %1520 = vmatprep.subr.mxu0 0.0
        %1521 = vmatpush1.msra.mxu0 0.0
        %1522 = vmatprep.subr.mxu0 0.0
        %1523 = vmatpush1.msra.mxu0 0.0
        %1524 = vmatprep.subr.mxu0 0.0
        %1525 = vmatpush1.msra.mxu0 0.0
        %1526 = vmatprep.subr.mxu0 0.0
        %1527 = vmatpush1.msra.mxu0 0.0
        %1528 = vmatprep.subr.mxu0 0.0
        %1529 = vmatpush1.msra.mxu0 0.0
        %1530 = vmatprep.subr.mxu0 0.0
        %1531 = vmatpush1.msra.mxu0 0.0
        %1532 = vmatprep.subr.mxu0 0.0
        %1533 = vmatpush1.msra.mxu0 0.0
        %1534 = vmatprep.subr.mxu0 0.0
        %1535 = vmatpush1.msra.mxu0 0.0
        %1536 = vmatprep.subr.mxu0 0.0
        %1537 = vmatpush1.msra.mxu0 0.0
        %1538 = vmatprep.subr.mxu0 0.0
        %1539 = vmatpush1.msra.mxu0 0.0
        %1540 = vmatprep.subr.mxu0 0.0
        %1541 = vmatpush1.msra.mxu0 0.0
        %1542 = vmatprep.subr.mxu0 0.0
        %1543 = vmatpush1.msra.mxu0 0.0
        %1544 = vmatprep.subr.mxu0 0.0
        %1545 = vmatpush1.msra.mxu0 0.0
        %1546 = vmatprep.subr.mxu0 0.0
        %1547 = vmatpush1.msra.mxu0 0.0
        %1548 = vmatprep.subr.mxu0 0.0
        %1549 = vmatpush1.msra.mxu0 0.0
        %1550 = vmatprep.subr.mxu0 0.0
        %1551 = vmatpush1.msra.mxu0 0.0
        %1552 = vmatprep.subr.mxu0 0.0
        %1553 = vmatpush1.msra.mxu0 0.0
        %1554 = vmatprep.subr.mxu0 0.0
        %1555 = vmatpush1.msra.mxu0 0.0
        %1556 = vmatprep.subr.mxu0 0.0
        %1557 = vmatpush1.msra.mxu0 0.0
        %1558 = vmatprep.subr.mxu0 0.0
        %1559 = vmatpush1.msra.mxu0 0.0
        %1560 = vmatprep.subr.mxu0 0.0
        %1561 = vmatpush1.msra.mxu0 0.0
        %1562 = vmatprep.mubr.f32.mxu0 0.0
        %1563 = vmatmul.mubr.f32.gmra.mrb[0].mxu0 %v1496
        %v1564 = vpop.f32.mrb[0].mxu0
        %v1565 = vadd.f32 0.0, %v1564
        %v1566 = vpop.f32.mrb[0].mxu0
        %1567 = vdwg.mxu0
        %1568 = vrot.lane.b32.xlu0 %v664, 32
        %v1569 = vpop.permute.xlu0 %1568
        %v1572 = vsel %vm667, %v1187, 0
        %1574 = vmatprep.subr.mxu0 0.0
        %1575 = vmatpush1.msra.mxu0 %v1569
        %1576 = vmatprep.subr.mxu0 0.0
        %1577 = vmatpush1.msra.mxu0 0.0
        %1578 = vmatprep.subr.mxu0 0.0
        %1579 = vmatpush1.msra.mxu0 0.0
        %1580 = vmatprep.subr.mxu0 0.0
        %1581 = vmatpush1.msra.mxu0 0.0
        %1582 = vmatprep.subr.mxu0 0.0
        %1583 = vmatpush1.msra.mxu0 0.0
        %1584 = vmatprep.subr.mxu0 0.0
        %1585 = vmatpush1.msra.mxu0 0.0
        %1586 = vmatprep.subr.mxu0 0.0
        %1587 = vmatpush1.msra.mxu0 0.0
        %1588 = vmatprep.subr.mxu0 0.0
        %1589 = vmatpush1.msra.mxu0 0.0
        %1590 = vmatprep.subr.mxu0 0.0
        %1591 = vmatpush1.msra.mxu0 0.0
        %1592 = vmatprep.subr.mxu0 0.0
        %1593 = vmatpush1.msra.mxu0 0.0
        %1594 = vmatprep.subr.mxu0 0.0
        %1595 = vmatpush1.msra.mxu0 0.0
        %1596 = vmatprep.subr.mxu0 0.0
        %1597 = vmatpush1.msra.mxu0 0.0
        %1598 = vmatprep.subr.mxu0 0.0
        %1599 = vmatpush1.msra.mxu0 0.0
        %1600 = vmatprep.subr.mxu0 0.0
        %1601 = vmatpush1.msra.mxu0 0.0
        %1602 = vmatprep.subr.mxu0 0.0
        %1603 = vmatpush1.msra.mxu0 0.0
        %1604 = vmatprep.subr.mxu0 0.0
        %1605 = vmatpush1.msra.mxu0 0.0
        %1606 = vmatprep.subr.mxu0 0.0
        %1607 = vmatpush1.msra.mxu0 0.0
        %1608 = vmatprep.subr.mxu0 0.0
        %1609 = vmatpush1.msra.mxu0 0.0
        %1610 = vmatprep.subr.mxu0 0.0
        %1611 = vmatpush1.msra.mxu0 0.0
        %1612 = vmatprep.subr.mxu0 0.0
        %1613 = vmatpush1.msra.mxu0 0.0
        %1614 = vmatprep.subr.mxu0 0.0
        %1615 = vmatpush1.msra.mxu0 0.0
        %1616 = vmatprep.subr.mxu0 0.0
        %1617 = vmatpush1.msra.mxu0 0.0
        %1618 = vmatprep.subr.mxu0 0.0
        %1619 = vmatpush1.msra.mxu0 0.0
        %1620 = vmatprep.subr.mxu0 0.0
        %1621 = vmatpush1.msra.mxu0 0.0
        %1622 = vmatprep.subr.mxu0 0.0
        %1623 = vmatpush1.msra.mxu0 0.0
        %1624 = vmatprep.subr.mxu0 0.0
        %1625 = vmatpush1.msra.mxu0 0.0
        %1626 = vmatprep.subr.mxu0 0.0
        %1627 = vmatpush1.msra.mxu0 0.0
        %1628 = vmatprep.subr.mxu0 0.0
        %1629 = vmatpush1.msra.mxu0 0.0
        %1630 = vmatprep.subr.mxu0 0.0
        %1631 = vmatpush1.msra.mxu0 0.0
        %1632 = vmatprep.subr.mxu0 0.0
        %1633 = vmatpush1.msra.mxu0 0.0
        %1634 = vmatprep.subr.mxu0 0.0
        %1635 = vmatpush1.msra.mxu0 0.0
        %1636 = vmatprep.subr.mxu0 0.0
        %1637 = vmatpush1.msra.mxu0 0.0
        %1638 = vmatprep.mubr.f32.mxu0 0.0
        %1639 = vmatmul.mubr.f32.gmra.mrb[0].mxu0 %v1572
        %v1640 = vpop.f32.mrb[0].mxu0
        %v1641 = vadd.f32 0.0, %v1640
        %v1642 = vpop.f32.mrb[0].mxu0
        %1643 = vdwg.mxu0
        %1645 = vrot.lane.b32.xlu0 %v1337, 8
        %v1646 = vpop.permute.xlu0 %1645
        %1649 = vrot.lane.b32.xlu0 %v1413, 16
        %v1650 = vpop.permute.xlu0 %1649
        %1653 = vrot.lane.b32.xlu0 %v1489, 24
        %v1654 = vpop.permute.xlu0 %1653
        %1657 = vrot.lane.b32.xlu0 %v1565, 32
        %v1658 = vpop.permute.xlu0 %1657
        %1661 = vrot.lane.b32.xlu0 %v1641, 40
        %v1662 = vpop.permute.xlu0 %1661
        %v1664 = vsel %vm667, %v1261, %v1646
        %vm1665 = vcmask 130048
        %v1666 = vsel %vm1665, %v1664, %v1650
        %vm1667 = vcmask 195584
        %v1668 = vsel %vm1667, %v1666, %v1654
        %vm1669 = vcmask 261120
        %v1670 = vsel %vm1669, %v1668, %v1658
        %vm1671 = vcmask 326656
        %v1672 = vsel %vm1671, %v1670, %v1662
        %v1673 = vld [vmem:[%s500] sm:$0xff]
        %v1674 = vld [vmem:[%s500 + $0x8] sm:$0xff]
        %v1675 = vld [vmem:[%s500 + $0x10] sm:$0xff]
        %v1676 = vld [vmem:[%s500 + $0x18] sm:$0xff]
        %v1677 = vld [vmem:[%s500 + $0x20] sm:$0xff]
        %v1678 = vld [vmem:[%s500 + $0x28] sm:$0xff]
        %v1679 = vlaneseq
        %v1680 = vshrl.u32 %v1679, 7
        %v1681 = vsub.s32 2, %v1680
        %v1682 = vrot.slane %v525, %v1681
        %v1684 = vsel %vm526, %v1672, 0
        %1686 = vmatprep.subr.mxu0 0.0
        %1687 = vmatpush1.msra.mxu0 %v1673
        %1688 = vmatprep.subr.mxu0 0.0
        %1689 = vmatpush1.msra.mxu0 %v1674
        %1690 = vmatprep.subr.mxu0 0.0
        %1691 = vmatpush1.msra.mxu0 %v1675
        %1692 = vmatprep.subr.mxu0 0.0
        %1693 = vmatpush1.msra.mxu0 %v1676
        %1694 = vmatprep.subr.mxu0 0.0
        %1695 = vmatpush1.msra.mxu0 %v1677
        %1696 = vmatprep.subr.mxu0 0.0
        %1697 = vmatpush1.msra.mxu0 %v1678
        %1698 = vmatprep.subr.mxu0 0.0
        %1699 = vmatpush1.msra.mxu0 0.0
        %1700 = vmatprep.subr.mxu0 0.0
        %1701 = vmatpush1.msra.mxu0 0.0
        %1702 = vmatprep.subr.mxu0 0.0
        %1703 = vmatpush1.msra.mxu0 0.0
        %1704 = vmatprep.subr.mxu0 0.0
        %1705 = vmatpush1.msra.mxu0 0.0
        %1706 = vmatprep.subr.mxu0 0.0
        %1707 = vmatpush1.msra.mxu0 0.0
        %1708 = vmatprep.subr.mxu0 0.0
        %1709 = vmatpush1.msra.mxu0 0.0
        %1710 = vmatprep.subr.mxu0 0.0
        %1711 = vmatpush1.msra.mxu0 0.0
        %1712 = vmatprep.subr.mxu0 0.0
        %1713 = vmatpush1.msra.mxu0 0.0
        %1714 = vmatprep.subr.mxu0 0.0
        %1715 = vmatpush1.msra.mxu0 0.0
        %1716 = vmatprep.subr.mxu0 0.0
        %1717 = vmatpush1.msra.mxu0 0.0
        %1718 = vmatprep.subr.mxu0 0.0
        %1719 = vmatpush1.msra.mxu0 0.0
        %1720 = vmatprep.subr.mxu0 0.0
        %1721 = vmatpush1.msra.mxu0 0.0
        %1722 = vmatprep.subr.mxu0 0.0
        %1723 = vmatpush1.msra.mxu0 0.0
        %1724 = vmatprep.subr.mxu0 0.0
        %1725 = vmatpush1.msra.mxu0 0.0
        %1726 = vmatprep.subr.mxu0 0.0
        %1727 = vmatpush1.msra.mxu0 0.0
        %1728 = vmatprep.subr.mxu0 0.0
        %1729 = vmatpush1.msra.mxu0 0.0
        %1730 = vmatprep.subr.mxu0 0.0
        %1731 = vmatpush1.msra.mxu0 0.0
        %1732 = vmatprep.subr.mxu0 0.0
        %1733 = vmatpush1.msra.mxu0 0.0
        %1734 = vmatprep.subr.mxu0 0.0
        %1735 = vmatpush1.msra.mxu0 0.0
        %1736 = vmatprep.subr.mxu0 0.0
        %1737 = vmatpush1.msra.mxu0 0.0
        %1738 = vmatprep.subr.mxu0 0.0
        %1739 = vmatpush1.msra.mxu0 0.0
        %1740 = vmatprep.subr.mxu0 0.0
        %1741 = vmatpush1.msra.mxu0 0.0
        %1742 = vmatprep.subr.mxu0 0.0
        %1743 = vmatpush1.msra.mxu0 0.0
        %1744 = vmatprep.subr.mxu0 0.0
        %1745 = vmatpush1.msra.mxu0 0.0
        %1746 = vmatprep.subr.mxu0 0.0
        %1747 = vmatpush1.msra.mxu0 0.0
        %1748 = vmatprep.subr.mxu0 0.0
        %1749 = vmatpush1.msra.mxu0 0.0
        %1750 = vmatprep.mubr.f32.mxu0 0.0
        %1751 = vmatmul.mubr.f32.gmra.mrb[0].mxu0 %v1684
        %v1752 = vpop.f32.mrb[0].mxu0
        %v1753 = vadd.f32 %v1682, %v1752
        %v1754 = vpop.f32.mrb[0].mxu0
        %1755 = vdwg.mxu0
        %v1756 = vadd.f32 %v524, %v1753
        %v1757 = vsel %vm526, %v1756, 0.0
        %1758 = vadd.xlane.f32.xlu0 %v1757
        %v1759 = vpop.xlane.xlu0 %1758
        %v1760 = vmul.f32 %v1759, %v530
        %v1761 = vsub.f32 %v1756, %v1760
        %v1762 = vmul.f32 %v1761, %v1761
        %v1763 = vsel %vm526, %v1762, 0.0
        %1764 = vadd.xlane.f32.xlu0 %v1763
        %v1765 = vpop.xlane.xlu0 %1764
        %v1766 = vmul.f32 %v1765, %v530
        %v1767 = vadd.f32 %v1766, 1e-06
        %v1768 = vrsqrt.pop %v1767
        %v1769 = vmul.f32 %v1761, %v1768
        %v1770 = vlaneseq
        %v1771 = vshrl.u32 %v1770, 7
        %v1772 = vsub.s32 3, %v1771
        %v1773 = vrot.slane %v525, %v1772
        %v1774 = vmul.f32 %v1769, %v1773
        %v1775 = vlaneseq
        %v1776 = vshrl.u32 %v1775, 7
        %v1777 = vsub.s32 4, %v1776
        %v1778 = vrot.slane %v525, %v1777
        %v1779 = vadd.f32 %v1774, %v1778
        %v1780 = vld [vmem:[%s505] sm:$0xff]
        %v1781 = vld [vmem:[%s505 + $0x8] sm:$0xff]
        %v1782 = vld [vmem:[%s505 + $0x10] sm:$0xff]
        %v1783 = vld [vmem:[%s505 + $0x18] sm:$0xff]
        %v1784 = vld [vmem:[%s505 + $0x20] sm:$0xff]
        %v1785 = vld [vmem:[%s505 + $0x28] sm:$0xff]
        %v1786 = vld [vmem:[%s505 + $0x30] sm:$0xff]
        %v1787 = vld [vmem:[%s505 + $0x38] sm:$0xff]
        %v1788 = vld [vmem:[%s505 + $0x40] sm:$0xff]
        %v1789 = vld [vmem:[%s505 + $0x48] sm:$0xff]
        %v1790 = vld [vmem:[%s505 + $0x50] sm:$0xff]
        %v1791 = vld [vmem:[%s505 + $0x58] sm:$0xff]
        %v1792 = vld [vmem:[%s509] sm:$0x3]
        %v1794 = vlaneseq
        %v1795 = vshrl.u32 %v1794, 7
        %v1796 = vsub.s32 0, %v1795
        %v1797 = vrot.slane %v1792, %v1796
        %v1798 = vlaneseq
        %v1799 = vshrl.u32 %v1798, 7
        %v1800 = vsub.s32 1, %v1799
        %v1801 = vrot.slane %v1792, %v1800
        %v1805 = vsel %vm526, %v1779, 0
        %1807 = vmatprep.subr.mxu0 %v1781
        %1808 = vmatpush1.msra.mxu0 %v1780
        %1809 = vmatprep.subr.mxu0 %v1783
        %1810 = vmatpush1.msra.mxu0 %v1782
        %1811 = vmatprep.subr.mxu0 %v1785
        %1812 = vmatpush1.msra.mxu0 %v1784
        %1813 = vmatprep.subr.mxu0 %v1787
        %1814 = vmatpush1.msra.mxu0 %v1786
        %1815 = vmatprep.subr.mxu0 %v1789
        %1816 = vmatpush1.msra.mxu0 %v1788
        %1817 = vmatprep.subr.mxu0 %v1791
        %1818 = vmatpush1.msra.mxu0 %v1790
        %1819 = vmatprep.subr.mxu0 0.0
        %1820 = vmatpush1.msra.mxu0 0.0
        %1821 = vmatprep.subr.mxu0 0.0
        %1822 = vmatpush1.msra.mxu0 0.0
        %1823 = vmatprep.subr.mxu0 0.0
        %1824 = vmatpush1.msra.mxu0 0.0
        %1825 = vmatprep.subr.mxu0 0.0
        %1826 = vmatpush1.msra.mxu0 0.0
        %1827 = vmatprep.subr.mxu0 0.0
        %1828 = vmatpush1.msra.mxu0 0.0
        %1829 = vmatprep.subr.mxu0 0.0
        %1830 = vmatpush1.msra.mxu0 0.0
        %1831 = vmatprep.subr.mxu0 0.0
        %1832 = vmatpush1.msra.mxu0 0.0
        %1833 = vmatprep.subr.mxu0 0.0
        %1834 = vmatpush1.msra.mxu0 0.0
        %1835 = vmatprep.subr.mxu0 0.0
        %1836 = vmatpush1.msra.mxu0 0.0
        %1837 = vmatprep.subr.mxu0 0.0
        %1838 = vmatpush1.msra.mxu0 0.0
        %1839 = vmatprep.subr.mxu0 0.0
        %1840 = vmatpush1.msra.mxu0 0.0
        %1841 = vmatprep.subr.mxu0 0.0
        %1842 = vmatpush1.msra.mxu0 0.0
        %1843 = vmatprep.subr.mxu0 0.0
        %1844 = vmatpush1.msra.mxu0 0.0
        %1845 = vmatprep.subr.mxu0 0.0
        %1846 = vmatpush1.msra.mxu0 0.0
        %1847 = vmatprep.subr.mxu0 0.0
        %1848 = vmatpush1.msra.mxu0 0.0
        %1849 = vmatprep.subr.mxu0 0.0
        %1850 = vmatpush1.msra.mxu0 0.0
        %1851 = vmatprep.subr.mxu0 0.0
        %1852 = vmatpush1.msra.mxu0 0.0
        %1853 = vmatprep.subr.mxu0 0.0
        %1854 = vmatpush1.msra.mxu0 0.0
        %1855 = vmatprep.subr.mxu0 0.0
        %1856 = vmatpush1.msra.mxu0 0.0
        %1857 = vmatprep.subr.mxu0 0.0
        %1858 = vmatpush1.msra.mxu0 0.0
        %1859 = vmatprep.subr.mxu0 0.0
        %1860 = vmatpush1.msra.mxu0 0.0
        %1861 = vmatprep.subr.mxu0 0.0
        %1862 = vmatpush1.msra.mxu0 0.0
        %1863 = vmatprep.subr.mxu0 0.0
        %1864 = vmatpush1.msra.mxu0 0.0
        %1865 = vmatprep.subr.mxu0 0.0
        %1866 = vmatpush1.msra.mxu0 0.0
        %1867 = vmatprep.subr.mxu0 0.0
        %1868 = vmatpush1.msra.mxu0 0.0
        %1869 = vmatprep.subr.mxu0 0.0
        %1870 = vmatpush1.msra.mxu0 0.0
        %1871 = vmatprep.mubr.f32.mxu0 0.0
        %1872 = vmatmul.mubr.f32.gmra.mrb[0].mxu0 %v1805
        %v1873 = vpop.f32.mrb[0].mxu0
        %v1874 = vadd.f32 %v1797, %v1873
        %v1875 = vpop.f32.mrb[0].mxu0
        %v1876 = vadd.f32 %v1801, %v1875
        %1877 = vdwg.mxu0
        %v1878 = vmul.f32 %v1874, 0.5
        %v1879 = vmul.f32 %v1876, 0.5
        %v1880 = vmul.f32 %v1874, 0.70710677
        %v1881 = vmul.f32 %v1876, 0.70710677
        %v1882 = vand.u32 2147483647, %v1880
        %v1883 = vand.u32 2147483647, %v1881
        %v1884 = vmul.f32 %v1882, 0.3275911
        %v1885 = vmul.f32 %v1883, 0.3275911
        %v1886 = vadd.f32 %v1884, 1.0
        %v1887 = vadd.f32 %v1885, 1.0
        %v1888 = vrcp.pop %v1886
        %v1889 = vmul.f32 1.0, %v1888
        %v1890 = vrcp.pop %v1887
        %v1891 = vmul.f32 1.0, %v1890
        %v1892 = vmul.f32 %v1889, 1.0614054
        %v1893 = vmul.f32 %v1891, 1.0614054
        %v1894 = vadd.f32 %v1892, -1.4531521
        %v1895 = vadd.f32 %v1893, -1.4531521
        %v1896 = vmul.f32 %v1894, %v1889
        %v1897 = vmul.f32 %v1895, %v1891
        %v1898 = vadd.f32 %v1896, 1.4214138
        %v1899 = vadd.f32 %v1897, 1.4214138
        %v1900 = vmul.f32 %v1898, %v1889
        %v1901 = vmul.f32 %v1899, %v1891
        %v1902 = vadd.f32 %v1900, -0.28449672
        %v1903 = vadd.f32 %v1901, -0.28449672
        %v1904 = vmul.f32 %v1902, %v1889
        %v1905 = vmul.f32 %v1903, %v1891
        %v1906 = vadd.f32 %v1904, 0.2548296
        %v1907 = vadd.f32 %v1905, 0.2548296
        %v1908 = vmul.f32 %v1906, %v1889
        %v1909 = vmul.f32 %v1907, %v1891
        %v1910 = vsub.f32 0.0, %v1882
        %v1911 = vsub.f32 0.0, %v1883
        %v1912 = vmul.f32 %v1910, %v1882
        %v1913 = vmul.f32 %v1911, %v1883
        %v1914 = vmul.f32 %v1912, 1.442695
        %v1915 = vpow.pop %v1914
        %v1916 = vmul.f32 %v1913, 1.442695
        %v1917 = vpow.pop %v1916
        %v1918 = vmul.f32 %v1908, %v1915
        %v1919 = vmul.f32 %v1909, %v1917
        %v1920 = vsub.f32 1.0, %v1918
        %v1921 = vsub.f32 1.0, %v1919
        %vm1922 = vcmp.ge.f32.partialorder %v1880, 0.0
        %vm1923 = vcmp.ge.f32.partialorder %v1881, 0.0
        %v1924 = vsub.f32 0.0, %v1920
        %v1925 = vsub.f32 0.0, %v1921
        %v1926 = vsel %vm1922, %v1920, %v1924
        %v1927 = vsel %vm1923, %v1921, %v1925
        %v1928 = vadd.f32 %v1926, 1.0
        %v1929 = vadd.f32 %v1927, 1.0
        %v1930 = vmul.f32 %v1878, %v1928
        %v1931 = vmul.f32 %v1879, %v1929
        %v1932 = vld [vmem:[%s514] sm:$0xff]
        %v1933 = vld [vmem:[%s514 + $0x8] sm:$0xff]
        %v1934 = vld [vmem:[%s514 + $0x10] sm:$0xff]
        %v1935 = vld [vmem:[%s514 + $0x18] sm:$0xff]
        %v1936 = vld [vmem:[%s514 + $0x20] sm:$0xff]
        %v1937 = vld [vmem:[%s514 + $0x28] sm:$0xff]
        %v1938 = vld [vmem:[%s514 + $0x30] sm:$0xff]
        %v1939 = vld [vmem:[%s514 + $0x38] sm:$0xff]
        %v1940 = vld [vmem:[%s514 + $0x40] sm:$0xff]
        %v1941 = vld [vmem:[%s514 + $0x48] sm:$0xff]
        %v1942 = vld [vmem:[%s514 + $0x50] sm:$0xff]
        %v1943 = vld [vmem:[%s514 + $0x58] sm:$0xff]
        %v1944 = vld [vmem:[%s514 + $0x60] sm:$0xff]
        %v1945 = vld [vmem:[%s514 + $0x68] sm:$0xff]
        %v1946 = vld [vmem:[%s514 + $0x70] sm:$0xff]
        %v1947 = vld [vmem:[%s514 + $0x78] sm:$0xff]
        %v1948 = vld [vmem:[%s514 + $0x80] sm:$0xff]
        %v1949 = vld [vmem:[%s514 + $0x88] sm:$0xff]
        %v1950 = vld [vmem:[%s514 + $0x90] sm:$0xff]
        %v1951 = vld [vmem:[%s514 + $0x98] sm:$0xff]
        %v1952 = vld [vmem:[%s514 + $0xa0] sm:$0xff]
        %v1953 = vld [vmem:[%s514 + $0xa8] sm:$0xff]
        %v1954 = vld [vmem:[%s514 + $0xb0] sm:$0xff]
        %v1955 = vld [vmem:[%s514 + $0xb8] sm:$0xff]
        %v1956 = vlaneseq
        %v1957 = vshrl.u32 %v1956, 7
        %v1958 = vsub.s32 5, %v1957
        %v1959 = vrot.slane %v525, %v1958
        %vm1960 = vcmask 523264
        %v1962 = vsel %vm1960, %v1931, 0
        %1964 = vmatprep.subr.mxu0 0.0
        %1965 = vmatpush1.msra.mxu0 %v1932
        %1966 = vmatprep.subr.mxu0 0.0
        %1967 = vmatpush1.msra.mxu0 %v1933
        %1968 = vmatprep.subr.mxu0 0.0
        %1969 = vmatpush1.msra.mxu0 %v1934
        %1970 = vmatprep.subr.mxu0 0.0
        %1971 = vmatpush1.msra.mxu0 %v1935
        %1972 = vmatprep.subr.mxu0 0.0
        %1973 = vmatpush1.msra.mxu0 %v1936
        %1974 = vmatprep.subr.mxu0 0.0
        %1975 = vmatpush1.msra.mxu0 %v1937
        %1976 = vmatprep.subr.mxu0 0.0
        %1977 = vmatpush1.msra.mxu0 %v1938
        %1978 = vmatprep.subr.mxu0 0.0
        %1979 = vmatpush1.msra.mxu0 %v1939
        %1980 = vmatprep.subr.mxu0 0.0
        %1981 = vmatpush1.msra.mxu0 %v1940
        %1982 = vmatprep.subr.mxu0 0.0
        %1983 = vmatpush1.msra.mxu0 %v1941
        %1984 = vmatprep.subr.mxu0 0.0
        %1985 = vmatpush1.msra.mxu0 %v1942
        %1986 = vmatprep.subr.mxu0 0.0
        %1987 = vmatpush1.msra.mxu0 %v1943
        %1988 = vmatprep.subr.mxu0 0.0
        %1989 = vmatpush1.msra.mxu0 %v1944
        %1990 = vmatprep.subr.mxu0 0.0
        %1991 = vmatpush1.msra.mxu0 %v1945
        %1992 = vmatprep.subr.mxu0 0.0
        %1993 = vmatpush1.msra.mxu0 %v1946
        %1994 = vmatprep.subr.mxu0 0.0
        %1995 = vmatpush1.msra.mxu0 %v1947
        %1996 = vmatprep.subr.mxu0 0.0
        %1997 = vmatpush1.msra.mxu0 %v1948
        %1998 = vmatprep.subr.mxu0 0.0
        %1999 = vmatpush1.msra.mxu0 %v1949
        %2000 = vmatprep.subr.mxu0 0.0
        %2001 = vmatpush1.msra.mxu0 %v1950
        %2002 = vmatprep.subr.mxu0 0.0
        %2003 = vmatpush1.msra.mxu0 %v1951
        %2004 = vmatprep.subr.mxu0 0.0
        %2005 = vmatpush1.msra.mxu0 %v1952
        %2006 = vmatprep.subr.mxu0 0.0
        %2007 = vmatpush1.msra.mxu0 %v1953
        %2008 = vmatprep.subr.mxu0 0.0
        %2009 = vmatpush1.msra.mxu0 %v1954
        %2010 = vmatprep.subr.mxu0 0.0
        %2011 = vmatpush1.msra.mxu0 %v1955
        %2012 = vmatprep.subr.mxu0 0.0
        %2013 = vmatpush1.msra.mxu0 0.0
        %2014 = vmatprep.subr.mxu0 0.0
        %2015 = vmatpush1.msra.mxu0 0.0
        %2016 = vmatprep.subr.mxu0 0.0
        %2017 = vmatpush1.msra.mxu0 0.0
        %2018 = vmatprep.subr.mxu0 0.0
        %2019 = vmatpush1.msra.mxu0 0.0
        %2020 = vmatprep.subr.mxu0 0.0
        %2021 = vmatpush1.msra.mxu0 0.0
        %2022 = vmatprep.subr.mxu0 0.0
        %2023 = vmatpush1.msra.mxu0 0.0
        %2024 = vmatprep.subr.mxu0 0.0
        %2025 = vmatpush1.msra.mxu0 0.0
        %2026 = vmatprep.subr.mxu0 0.0
        %2027 = vmatpush1.msra.mxu0 0.0
        %2028 = vmatprep.mubr.f32.mxu0 %v1962
        %2029 = vmatmul.mubr.f32.gmra.mrb[0].mxu0 %v1930
        %v2030 = vpop.f32.mrb[0].mxu0
        %v2031 = vadd.f32 %v1959, %v2030
        %v2032 = vpop.f32.mrb[0].mxu0
        %2033 = vdwg.mxu0
        %v2034 = vadd.f32 %v1756, %v2031
        %p2035 = scmp.lt.s32.totalorder %s29, 5
        // Predicated region
        $region65: #{vit_forward.1} parent=59 // pred_check
          %p2036 = pneg %p2035
        $region66: #{vit_forward.1} parent=59 // pred_check_branch
          %2038 = sbr.rel (%p2036) target = $region68
        $region67: #{vit_forward.1} parent=59 // pred_region
          %2039 = vst.msk [vmem:[%s474] sm:$0xff] %vm526, %v2034
        $region68: #{vit_forward.1} parent=59 // pred_fallthru
          _
        %p2040 = scmp.eq.s32.totalorder %s29, 5
        // Predicated region
        $region69: #{vit_forward.1} parent=59 // pred_check
          %p2041 = pneg %p2040
        $region70: #{vit_forward.1} parent=59 // pred_check_branch
          %2043 = sbr.rel (%p2041) target = $region72
        $region71: #{vit_forward.1} parent=59 // pred_region
          %v2044 = vld [vmem:[%s9] sm:$0x1]
          %v2045 = vld [vmem:[%s9 + $0x1] sm:$0x1]
          %v2046 = vsel %vm526, %v2034, 0.0
          %2047 = vadd.xlane.f32.xlu0 %v2046
          %v2048 = vpop.xlane.xlu0 %2047
          %v2049 = vmul.f32 %v2048, %v530
          %v2050 = vsub.f32 %v2034, %v2049
          %v2051 = vmul.f32 %v2050, %v2050
          %v2052 = vsel %vm526, %v2051, 0.0
          %2053 = vadd.xlane.f32.xlu0 %v2052
          %v2054 = vpop.xlane.xlu0 %2053
          %v2055 = vmul.f32 %v2054, %v530
          %v2056 = vadd.f32 %v2055, 1e-06
          %v2057 = vrsqrt.pop %v2056
          %v2058 = vmul.f32 %v2050, %v2057
          %v2059 = vlaneseq
          %v2060 = vshrl.u32 %v2059, 7
          %v2061 = vsub.s32 0, %v2060
          %v2062 = vrot.slane %v2044, %v2061
          %v2063 = vmul.f32 %v2058, %v2062
          %v2064 = vlaneseq
          %v2065 = vshrl.u32 %v2064, 7
          %v2066 = vsub.s32 0, %v2065
          %v2067 = vrot.slane %v2045, %v2066
          %v2068 = vadd.f32 %v2063, %v2067
          %2069 = vst.msk [vmem:[%s474] sm:$0xff] %vm526, %v2068
        $region72: #{vit_forward.1} parent=59 // pred_fallthru
          _
        %s2070 = sand.u32 %s299, 1
        %s2071 = scalar_lea.sflag [#allocation3], %s2070
        %s2072 = sand.u32 %s299, 1
        %s2073 = smul.addr %s2072, 8
        %s2074 = scalar_lea.vmem [#allocation2], %s2073
        // Predicated region
        $region73: #{vit_forward.1} parent=59 // pred_check
          %p2075 = pneg %p309
        $region74: #{vit_forward.1} parent=59 // pred_check_branch
          %2077 = sbr.rel (%p2075) target = $region76
        $region75: #{vit_forward.1} parent=59 // pred_region
          %s2079 = ssub.s32 128, 128
          %2080 = vsyncadd %s2071, %s2079
          %s2081 = smul.addr %s28, 128
          %s2082 = scalar_lea.hbm %s10, %s2081
          %s2084 = sshll.u32 %s2074, 4
          %s2085 = int_to_ptr.vmem [resolvable:$true] %s2084
          %2087 = dma.vmem_to_hbm [thread:$0]  %s2085, 128, %s2082, %s2071
        $region76: #{vit_forward.1} parent=59 // pred_fallthru
          _
      $region60: #{vit_forward.1} parent=5 // pred_fallthru
        _
      %p2088 = scmp.le.s32.totalorder 2, %s19
      // Predicated region
      $region77: #{vit_forward.1} parent=5 // pred_check
        %p2089 = pneg %p2088
      $region78: #{vit_forward.1} parent=5 // pred_check_branch
        %2091 = sbr.rel (%p2089) target = $region80
      $region79: #{vit_forward.1} parent=5 // pred_region
        %s2092 = ssub.s32 %s19, 2
        // Predicated region
        $region81: #{vit_forward.1} parent=79 // pred_check
          %p2093 = pneg %p315
        $region82: #{vit_forward.1} parent=79 // pred_check_branch
          %2095 = sbr.rel (%p2093) target = $region84
        $region83: #{vit_forward.1} parent=79 // pred_region
          %s2096 = sand.u32 %s300, 1
          %s2097 = scalar_lea.sflag [#allocation3], %s2096
          %s2098 = sand.u32 %s300, 1
          %s2099 = smul.addr %s2098, 8
          %s2100 = scalar_lea.vmem [#allocation2], %s2099
          %2101 = dma.done %s2097, 128
        $region84: #{vit_forward.1} parent=79 // pred_fallthru
          _
      $region80: #{vit_forward.1} parent=5 // pred_fallthru
        _
    $region6: #{vit_forward.1} parent=1 // loop_footer
      %s23 = sadd.s32 1, %s19
    $region7: #{vit_forward.1} parent=1 // loop_footer_branch
      %18 = sbr.rel target = $region3
    $region8: #{vit_forward.1} parent=1 // loop_exit
      _
    %2102 = vsyncpa [#allocation3], 1
    %s2103 = scalar_lea.sflag [#allocation3], 1
    %2104 = vsyncpa %s2103, 1

</llo_original>
